<compile_context>
chip_gen: v5e
topology: v5e:2x2
jax: 0.10.0
libtpu: 0.0.40
codegen_flags: <defaults>
</compile_context>

<pallas_src>
import jax
import jax.numpy as jnp
from jax import lax
from jax.experimental import pallas as pl
from jax.experimental.pallas import tpu as pltpu


def _logprob_kernel(h_ref, w_ref, lbl_ref, out_ref, m_sc, l_sc, t_sc):
    """Grid = (m_tiles [parallel], v_tiles [arbitrary, last]).

    Online logsumexp over the streamed vocab axis + fused target-logit gather.
    """
    v = pl.program_id(1)
    nv = pl.num_programs(1)
    tile_v = w_ref.shape[1]

    @pl.when(v == 0)
    def _():
        m_sc[...] = jnp.full_like(m_sc, -jnp.inf)
        l_sc[...] = jnp.zeros_like(l_sc)
        t_sc[...] = jnp.zeros_like(t_sc)

    # [TM, TV] logits tile: bf16 operands, f32 accumulation on the MXU.
    logits = jnp.dot(h_ref[...], w_ref[...], preferred_element_type=jnp.float32)

    # Global vocab column index for this tile; mask built once per tile and
    # used for the target-logit extraction (exactly one hit across all tiles).
    col = lax.broadcasted_iota(jnp.int32, logits.shape, 1) + v * tile_v
    hit = col == lbl_ref[...]                                        # [TM, TV]
    t_sc[...] += jnp.sum(jnp.where(hit, logits, 0.0), axis=-1, keepdims=True)

    # Online (streaming) logsumexp over the vocab axis, f32 throughout.
    m_prev = m_sc[...]
    m_new = jnp.maximum(m_prev, jnp.max(logits, axis=-1, keepdims=True))
    l_sc[...] = jnp.exp(m_prev - m_new) * l_sc[...] + jnp.sum(
        jnp.exp(logits - m_new), axis=-1, keepdims=True)
    m_sc[...] = m_new

    @pl.when(v == nv - 1)
    def _():
        # log p(label) = logit[label] - logsumexp(logits)
        val = t_sc[...] - (m_sc[...] + jnp.log(l_sc[...]))           # [TM, 1]
        # Lane-dense store: fold the [TM, 1] column into a [1, TM] row with a
        # masked cross-sublane reduction (avoids an explicit relayout /
        # transpose; runs once per M tile so its cost is negligible).
        tm = val.shape[0]
        r = lax.broadcasted_iota(jnp.int32, (tm, tm), 0)
        c = lax.broadcasted_iota(jnp.int32, (tm, tm), 1)
        out_ref[...] = jnp.sum(jnp.where(r == c, val, 0.0), axis=0,
                               keepdims=True)


def _pick_tile_v(V, tv_max):
    """Largest multiple-of-128 divisor of V that is <= tv_max (else V)."""
    if V <= tv_max:
        return V
    t = (min(tv_max, V) // 128) * 128
    while t >= 128:
        if V % t == 0:
            return t
        t -= 128
    return V


def log_probs_from_hidden(hidden, w_lm, labels, *, tile_m=128, tile_v=2048,
                          vmem_limit_bytes=48 * 1024 * 1024):
    """Fused lm_head matmul + streaming log_softmax + label gather.

    hidden: [M, H] bf16 (M multiple of tile_m)
    w_lm:   [H, V] bf16
    labels: [M, 1] int32
    returns [M] f32 token log-probs
    """
    M, H = hidden.shape
    V = w_lm.shape[1]
    assert M % tile_m == 0
    tile_v = _pick_tile_v(V, tile_v)
    assert V % tile_v == 0
    num_m = M // tile_m
    num_v = V // tile_v

    out = pl.pallas_call(
        _logprob_kernel,
        out_shape=jax.ShapeDtypeStruct((num_m, tile_m), jnp.float32),
        grid_spec=pltpu.PrefetchScalarGridSpec(
            num_scalar_prefetch=0,
            grid=(num_m, num_v),                      # vocab (reduction) last
            in_specs=[
                pl.BlockSpec((tile_m, H), lambda i, v: (i, 0)),    # activations
                pl.BlockSpec((H, tile_v), lambda i, v: (0, v)),    # lm_head slab
                pl.BlockSpec((tile_m, 1), lambda i, v: (i, 0)),    # labels
            ],
            out_specs=pl.BlockSpec((1, tile_m), lambda i, v: (i, 0)),
            scratch_shapes=[
                pltpu.VMEM((tile_m, 1), jnp.float32),   # running max
                pltpu.VMEM((tile_m, 1), jnp.float32),   # running sum(exp)
                pltpu.VMEM((tile_m, 1), jnp.float32),   # running target logit
            ],
        ),
        compiler_params=pltpu.CompilerParams(
            dimension_semantics=("parallel", "arbitrary"),
            vmem_limit_bytes=vmem_limit_bytes,
        ),
    )(hidden, w_lm, labels)
    return out.reshape(-1)


class ActorPallas:
    """Synthetic stand-in for Actor(pretrain_or_model=<tiny causal LM>)."""

    def __init__(self, vocab, hidden, max_pos, key, *, tile_m=128, tile_v=2048):
        k1, k2, k3 = jax.random.split(key, 3)
        # Deterministic synthetic parameters (the module __init__ only loads a
        # pretrained LM; shapes here are the minimal causal-LM equivalents).
        self.tok_emb = 0.02 * jax.random.normal(k1, (vocab, hidden), jnp.float32)
        self.pos_emb = 0.02 * jax.random.normal(k2, (max_pos, hidden), jnp.float32)
        # lm_head kept in bfloat16 (Actor loads the HF model with bf16=True).
        self.w_lm = (0.02 * jax.random.normal(k3, (hidden, vocab), jnp.float32)
                     ).astype(jnp.bfloat16)
        self.vocab = vocab
        self.tile_m = tile_m
        self.tile_v = tile_v

    def forward(self, sequences, num_actions, attention_mask):
        """Returns action log probs, shape [B, num_actions] (return_type='p')."""
        B, S = sequences.shape
        # position_ids = attention_mask.cumsum(-1) - 1; masked_fill(mask==0, 1)
        position_ids = jnp.cumsum(attention_mask.astype(jnp.int32), axis=-1) - 1
        position_ids = jnp.where(attention_mask == 0, 1, position_ids)

        # Tiny synthetic causal-LM body (glue): embedding lookups in plain JAX.
        # TODO(synk): full transformer stack of the wrapped HF model is out of
        # scope; only the lm_head + log_probs_from_logits hot path is kernelized.
        h = self.tok_emb[sequences] + self.pos_emb[position_ids]      # [B, S, H]

        # log_probs_from_logits(logits[:, :-1, :], sequences[:, 1:])
        h_shift = h[:, :-1, :].reshape(B * (S - 1), -1).astype(jnp.bfloat16)
        labels = sequences[:, 1:].reshape(B * (S - 1), 1).astype(jnp.int32)

        # pad rows to a multiple of tile_m for full-height MXU tiles
        M = h_shift.shape[0]
        tm = self.tile_m
        Mp = ((M + tm - 1) // tm) * tm
        h_pad = jnp.zeros((Mp, h_shift.shape[1]), h_shift.dtype).at[:M].set(h_shift)
        l_pad = jnp.zeros((Mp, 1), jnp.int32).at[:M].set(labels)

        logp = log_probs_from_hidden(h_pad, self.w_lm, l_pad,
                                     tile_m=tm, tile_v=self.tile_v)[:M]
        log_probs = logp.reshape(B, S - 1)
        return log_probs[:, -num_actions:]


def _reference_forward(actor, sequences, num_actions, attention_mask):
    """Pure-JAX reference of the same forward (for a correctness check)."""
    position_ids = jnp.cumsum(attention_mask.astype(jnp.int32), axis=-1) - 1
    position_ids = jnp.where(attention_mask == 0, 1, position_ids)
    h = actor.tok_emb[sequences] + actor.pos_emb[position_ids]
    h_bf = h[:, :-1, :].astype(jnp.bfloat16)
    logits = jnp.einsum("bsh,hv->bsv", h_bf, actor.w_lm,
                        preferred_element_type=jnp.float32)
    logp = jax.nn.log_softmax(logits.astype(jnp.float32), axis=-1)
    labels = sequences[:, 1:]
    gathered = jnp.take_along_axis(logp, labels[..., None], axis=-1)[..., 0]
    return gathered[:, -num_actions:]


if __name__ == "__main__":
    key = jax.random.PRNGKey(0)
    k_param, k_seq = jax.random.split(key)

    B, S, H, V = 2, 8, 32, 256
    num_actions = 4

    # tile_v=128 so the streamed-vocab / online-logsumexp path is exercised
    # (2 vocab grid steps) even at this toy vocab; real vocabs use the default.
    actor = ActorPallas(vocab=V, hidden=H, max_pos=S, key=k_param, tile_v=128)

    sequences = jax.random.randint(k_seq, (B, S), 0, V, dtype=jnp.int32)
    # left-padded second sample to exercise the position_id masking path
    attention_mask = jnp.ones((B, S), dtype=jnp.int32).at[1, :2].set(0)

    out = actor.forward(sequences, num_actions, attention_mask)
    out = jax.block_until_ready(out)
    assert out.shape == (B, num_actions), out.shape

    ref = _reference_forward(actor, sequences, num_actions, attention_mask)
    assert jnp.allclose(out, ref, atol=2e-3, rtol=2e-3), (out, ref)

    print("KERNEL_OK")
</pallas_src>

<mosaic_0001>
module attributes {stable_mosaic.version = 11 : i64} {
  func.func @_logprob_kernel(%arg0: i32, %arg1: i32, %arg2: memref<128x32xbf16, #tpu.memory_space<vmem>>, %arg3: memref<32x128xbf16, #tpu.memory_space<vmem>>, %arg4: memref<128x1xi32, #tpu.memory_space<vmem>>, %arg5: memref<1x128xf32, #tpu.memory_space<vmem>>, %arg6: memref<128x1xf32, #tpu.memory_space<vmem>>, %arg7: memref<128x1xf32, #tpu.memory_space<vmem>>, %arg8: memref<128x1xf32, #tpu.memory_space<vmem>>) attributes {dimension_semantics = [#tpu.dimension_semantics<parallel>, #tpu.dimension_semantics<arbitrary>], iteration_bounds = array<i64: 1, 2>, scalar_prefetch = 0 : i64, scratch_operands = 3 : i64, tpu.core_type = #tpu.core_type<tc>, window_params = [{transform_indices = @transform_0, window_bounds = array<i64: 128, 32>}, {transform_indices = @transform_1, window_bounds = array<i64: 32, 128>}, {transform_indices = @transform_2, window_bounds = array<i64: 128, 1>}, {transform_indices = @transform_3, window_bounds = array<i64: 1, 128>}]} {
    %c0_i32 = arith.constant 0 : i32
    %0 = arith.cmpi eq, %arg1, %c0_i32 : i32
    %1 = arith.extui %0 : i1 to i32
    %c0_i32_0 = arith.constant 0 : i32
    %2 = arith.cmpi ne, %1, %c0_i32_0 : i32
    scf.if %2 {
      %cst_23 = arith.constant 0xFF800000 : f32
      %39 = vector.broadcast %cst_23 : f32 to vector<128x1xf32>
      %c0_24 = arith.constant 0 : index
      %c0_25 = arith.constant 0 : index
      %40 = vector.load %arg6[%c0_24, %c0_25] : memref<128x1xf32, #tpu.memory_space<vmem>>, vector<128x1xf32>
      tpu.vector_store %arg6[%c0_24, %c0_25], %39 {strides = array<i32>} : memref<128x1xf32, #tpu.memory_space<vmem>>, vector<128x1xf32>,
      %cst_26 = arith.constant 0.000000e+00 : f32
      %41 = vector.broadcast %cst_26 : f32 to vector<128x1xf32>
      %c0_27 = arith.constant 0 : index
      %c0_28 = arith.constant 0 : index
      %42 = vector.load %arg7[%c0_27, %c0_28] : memref<128x1xf32, #tpu.memory_space<vmem>>, vector<128x1xf32>
      tpu.vector_store %arg7[%c0_27, %c0_28], %41 {strides = array<i32>} : memref<128x1xf32, #tpu.memory_space<vmem>>, vector<128x1xf32>,
      %cst_29 = arith.constant 0.000000e+00 : f32
      %43 = vector.broadcast %cst_29 : f32 to vector<128x1xf32>
      %c0_30 = arith.constant 0 : index
      %c0_31 = arith.constant 0 : index
      %44 = vector.load %arg8[%c0_30, %c0_31] : memref<128x1xf32, #tpu.memory_space<vmem>>, vector<128x1xf32>
      tpu.vector_store %arg8[%c0_30, %c0_31], %43 {strides = array<i32>} : memref<128x1xf32, #tpu.memory_space<vmem>>, vector<128x1xf32>,
    } else {
    }
    %c0 = arith.constant 0 : index
    %c0_1 = arith.constant 0 : index
    %3 = vector.load %arg2[%c0, %c0_1] : memref<128x32xbf16, #tpu.memory_space<vmem>>, vector<128x32xbf16>
    %c0_2 = arith.constant 0 : index
    %c0_3 = arith.constant 0 : index
    %4 = vector.load %arg3[%c0_2, %c0_3] : memref<32x128xbf16, #tpu.memory_space<vmem>>, vector<32x128xbf16>
    %cst = arith.constant dense<0.000000e+00> : vector<128x128xf32>
    %5 = tpu.matmul %3, %4, %cst {dimension_numbers = #tpu.dot_dimension_numbers<[1], [0], [0], [1], [0, 0, 1, 1], [], []>} : vector<128x32xbf16>, vector<32x128xbf16>, vector<128x128xf32> -> vector<128x128xf32>
    %6 = tpu.iota {dimensions = array<i32: 1>} : vector<128x128xi32>
    %c128_i32 = arith.constant 128 : i32
    %7 = arith.muli %arg1, %c128_i32 : i32
    %8 = vector.broadcast %7 : i32 to vector<128x128xi32>
    %9 = arith.addi %6, %8 : vector<128x128xi32>
    %c0_4 = arith.constant 0 : index
    %c0_5 = arith.constant 0 : index
    %10 = vector.load %arg4[%c0_4, %c0_5] : memref<128x1xi32, #tpu.memory_space<vmem>>, vector<128x1xi32>
    %11 = vector.broadcast %10 : vector<128x1xi32> to vector<128x128xi32>
    %12 = arith.cmpi eq, %9, %11 : vector<128x128xi32>
    %c0_6 = arith.constant 0 : index
    %c0_7 = arith.constant 0 : index
    %13 = vector.load %arg8[%c0_6, %c0_7] : memref<128x1xf32, #tpu.memory_space<vmem>>, vector<128x1xf32>
    %cst_8 = arith.constant 0.000000e+00 : f32
    %14 = vector.broadcast %cst_8 : f32 to vector<128x128xf32>
    %15 = arith.select %12, %5, %14 : vector<128x128xi1>, vector<128x128xf32>
    %cst_9 = arith.constant dense<0.000000e+00> : vector<128xf32>
    %16 = vector.multi_reduction <add>, %15, %cst_9 [1] : vector<128x128xf32> to vector<128xf32>
    %17 = vector.shape_cast %16 : vector<128xf32> to vector<128x1xf32>
    %18 = arith.addf %13, %17 : vector<128x1xf32>
    %c0_10 = arith.constant 0 : index
    %c0_11 = arith.constant 0 : index
    %19 = vector.load %arg8[%c0_10, %c0_11] : memref<128x1xf32, #tpu.memory_space<vmem>>, vector<128x1xf32>
    tpu.vector_store %arg8[%c0_10, %c0_11], %18 {strides = array<i32>} : memref<128x1xf32, #tpu.memory_space<vmem>>, vector<128x1xf32>,
    %c0_12 = arith.constant 0 : index
    %c0_13 = arith.constant 0 : index
    %20 = vector.load %arg6[%c0_12, %c0_13] : memref<128x1xf32, #tpu.memory_space<vmem>>, vector<128x1xf32>
    %cst_14 = arith.constant dense<0xFF800000> : vector<128xf32>
    %21 = vector.multi_reduction <maximumf>, %5, %cst_14 [1] : vector<128x128xf32> to vector<128xf32>
    %22 = vector.shape_cast %21 : vector<128xf32> to vector<128x1xf32>
    %23 = arith.maximumf %20, %22 : vector<128x1xf32>
    %24 = arith.subf %20, %23 : vector<128x1xf32>
    %25 = math.exp %24 : vector<128x1xf32>
    %c0_15 = arith.constant 0 : index
    %c0_16 = arith.constant 0 : index
    %26 = vector.load %arg7[%c0_15, %c0_16] : memref<128x1xf32, #tpu.memory_space<vmem>>, vector<128x1xf32>
    %27 = arith.mulf %25, %26 : vector<128x1xf32>
    %28 = vector.broadcast %23 : vector<128x1xf32> to vector<128x128xf32>
    %29 = arith.subf %5, %28 : vector<128x128xf32>
    %30 = math.exp %29 : vector<128x128xf32>
    %cst_17 = arith.constant dense<0.000000e+00> : vector<128xf32>
    %31 = vector.multi_reduction <add>, %30, %cst_17 [1] : vector<128x128xf32> to vector<128xf32>
    %32 = vector.shape_cast %31 : vector<128xf32> to vector<128x1xf32>
    %33 = arith.addf %27, %32 : vector<128x1xf32>
    %c0_18 = arith.constant 0 : index
    %c0_19 = arith.constant 0 : index
    %34 = vector.load %arg7[%c0_18, %c0_19] : memref<128x1xf32, #tpu.memory_space<vmem>>, vector<128x1xf32>
    tpu.vector_store %arg7[%c0_18, %c0_19], %33 {strides = array<i32>} : memref<128x1xf32, #tpu.memory_space<vmem>>, vector<128x1xf32>,
    %c0_20 = arith.constant 0 : index
    %c0_21 = arith.constant 0 : index
    %35 = vector.load %arg6[%c0_20, %c0_21] : memref<128x1xf32, #tpu.memory_space<vmem>>, vector<128x1xf32>
    tpu.vector_store %arg6[%c0_20, %c0_21], %23 {strides = array<i32>} : memref<128x1xf32, #tpu.memory_space<vmem>>, vector<128x1xf32>,
    %c1_i32 = arith.constant 1 : i32
    %36 = arith.cmpi eq, %arg1, %c1_i32 : i32
    %37 = arith.extui %36 : i1 to i32
    %c0_i32_22 = arith.constant 0 : i32
    %38 = arith.cmpi ne, %37, %c0_i32_22 : i32
    scf.if %38 {
      %c0_23 = arith.constant 0 : index
      %c0_24 = arith.constant 0 : index
      %39 = vector.load %arg8[%c0_23, %c0_24] : memref<128x1xf32, #tpu.memory_space<vmem>>, vector<128x1xf32>
      %c0_25 = arith.constant 0 : index
      %c0_26 = arith.constant 0 : index
      %40 = vector.load %arg6[%c0_25, %c0_26] : memref<128x1xf32, #tpu.memory_space<vmem>>, vector<128x1xf32>
      %c0_27 = arith.constant 0 : index
      %c0_28 = arith.constant 0 : index
      %41 = vector.load %arg7[%c0_27, %c0_28] : memref<128x1xf32, #tpu.memory_space<vmem>>, vector<128x1xf32>
      %42 = math.log %41 : vector<128x1xf32>
      %43 = arith.addf %40, %42 : vector<128x1xf32>
      %44 = arith.subf %39, %43 : vector<128x1xf32>
      %45 = tpu.iota {dimensions = array<i32: 0>} : vector<128x128xi32>
      %46 = tpu.iota {dimensions = array<i32: 1>} : vector<128x128xi32>
      %47 = arith.cmpi eq, %45, %46 : vector<128x128xi32>
      %cst_29 = arith.constant 0.000000e+00 : f32
      %48 = vector.shape_cast %44 : vector<128x1xf32> to vector<128x1xf32>
      %49 = vector.broadcast %48 : vector<128x1xf32> to vector<128x128xf32>
      %50 = vector.broadcast %cst_29 : f32 to vector<128x128xf32>
      %51 = arith.select %47, %49, %50 : vector<128x128xi1>, vector<128x128xf32>
      %cst_30 = arith.constant dense<0.000000e+00> : vector<128xf32>
      %52 = vector.multi_reduction <add>, %51, %cst_30 [0] : vector<128x128xf32> to vector<128xf32>
      %53 = vector.shape_cast %52 : vector<128xf32> to vector<1x128xf32>
      %c0_31 = arith.constant 0 : index
      %c0_32 = arith.constant 0 : index
      %54 = vector.load %arg5[%c0_31, %c0_32] : memref<1x128xf32, #tpu.memory_space<vmem>>, vector<1x128xf32>
      tpu.vector_store %arg5[%c0_31, %c0_32], %53 {strides = array<i32>} : memref<1x128xf32, #tpu.memory_space<vmem>>, vector<1x128xf32>,
    } else {
    }
    return
  }
  func.func @transform_0(%arg0: i32, %arg1: i32) -> (i32, i32) {
    %c0_i32 = arith.constant 0 : i32
    %c0_i32_0 = arith.constant 0 : i32
    return %arg0, %c0_i32 : i32, i32
  }
  func.func @transform_1(%arg0: i32, %arg1: i32) -> (i32, i32) {
    %c0_i32 = arith.constant 0 : i32
    %c0_i32_0 = arith.constant 0 : i32
    return %c0_i32, %arg1 : i32, i32
  }
  func.func @transform_2(%arg0: i32, %arg1: i32) -> (i32, i32) {
    %c0_i32 = arith.constant 0 : i32
    %c0_i32_0 = arith.constant 0 : i32
    return %arg0, %c0_i32 : i32, i32
  }
  func.func @transform_3(%arg0: i32, %arg1: i32) -> (i32, i32) {
    %c0_i32 = arith.constant 0 : i32
    %c0_i32_0 = arith.constant 0 : i32
    return %arg0, %c0_i32 : i32, i32
  }
}

</mosaic_0001>

<llo_original>
// kernel: tpu_custom_call.1
$region0: #{tpu_custom_call.1}
  #allocation0 [shape = 'u32[]', space=smem, size = 0x4, offset = 0x4, fixed_abs, tag = 'smem constant byte address 0x4 - core index']
  #allocation1 [shape = 'u32[72,128]{1,0:T(1,128)}', space=vmem, size = 0x9000, scoped, tag = 'internal scratch']
  #allocation2 [shape = 'f32[128,1]{1,0:T(8,128)}', space=vmem, size = 0x10000, scoped, tag = 'scratch operand']
  #allocation3 [shape = 'f32[128,1]{1,0:T(8,128)}', space=vmem, size = 0x10000, scoped, tag = 'scratch operand']
  #allocation4 [shape = 'f32[128,1]{1,0:T(8,128)}', space=vmem, size = 0x10000, scoped, tag = 'scratch operand']
  %s0 = inlined_call_operand.vmem [shape: bf16[128,32], index: 0, kind: input, shape index: {}]
  %s1 = inlined_call_operand.vmem [shape: bf16[32,256], index: 1, kind: input, shape index: {}]
  %s2 = inlined_call_operand.vmem [shape: s32[128,1], index: 2, kind: input, shape index: {}]
  %s3 = inlined_call_operand.hbm [shape: f32[1,128], index: 3, kind: output, shape index: {}]
  %s4 = sld [smem:[#allocation0]]
  $region94: #{tpu_custom_call.1} parent=0
    _
  %s6 = ssub.s32 1, %s4
  %s7 = scalar_select 0, %s6, %s4
  $region1: #{tpu_custom_call.1} parent=0
    #allocation5 [shape = 'u8[16384]{0}', space=vmem, size = 0x4000, scoped, tag = 'input window, operand 1']
    #allocation6 [shape = 'u8[512]{0}', space=vmem, size = 0x400, scoped, tag = 'output window, operand 0, single buffered']
    #allocation7 [shape = 's32[2]{0}', space=sflag, size = 0x8, scoped, tag = 'scoped memory for tpu_custom_call.1']
    %8 = vsyncpa [#allocation7], 0
    loop: start=0, step=1, limit=4
    $region2: #{tpu_custom_call.1} parent=1 // loop_pre_header
      _
    $region3: #{tpu_custom_call.1} parent=1 // loop_header
      %s10 = sphi 0, %s14
      %p11 = scmp.ge.s32.totalorder %s10, 4
      %s17 = sphi 0, %s29
      %s18 = sphi 0, %s25
      %s19 = sphi 0, %s17
      %s20 = sphi 0, %s18
      %s21 = sphi 0, %s19
      %s22 = sphi 0, %s20
      %s32 = sphi 0, %s34
      %s35 = sphi 0, %s32
      %s36 = sphi 0, %s35
      %s52 = sphi 0, %s36
      %s58 = sphi 0, %s60
      %s61 = sphi 0, %s58
      %s62 = sphi 0, %s61
      %s78 = sphi 0, %s62
      %s84 = sphi 0, %s86
      %s87 = sphi 0, %s84
      %s88 = sphi 0, %s87
      %s104 = sphi 0, %s88
      %s110 = sphi 0, %s112
      %s113 = sphi 0, %s110
      %s114 = sphi 0, %s113
      %s130 = sphi 0, %s114
    $region4: #{tpu_custom_call.1} parent=1 // loop_header_branch
      %13 = sbr.rel (%p11) target = $region8
    $region5: #{tpu_custom_call.1} parent=1 // loop_body
      %s15 = ssub.s32 %s10, 1
      %s16 = ssub.s32 %s10, 2
      %s23 = sadd.s32 1, %s18
      %p24 = scmp.ge.s32.totalorder %s23, 2
      %s25 = scalar_select %p24, 0, %s23
      %s26 = sadd.s32 1, %s17
      %s27 = scalar_select %p24, %s26, %s17
      %p28 = scmp.ge.s32.totalorder %s27, 1
      %s29 = scalar_select %p28, 0, %s27
      %s30 = ssub.s32 %s17, %s29
      %p31 = scmp.eq.s32.totalorder %s30, 0
      %s33 = sadd.s32 %s32, 1
      %s34 = scalar_select %p31, %s32, %s33
      %p37 = pneg %p31
      %p38 = scmp.eq.s32.totalorder %s10, 1
      %p39 = por %p37, %p38
      %p40 = scmp.ne.s32.totalorder %s32, %s35
      %p41 = scmp.eq.s32.totalorder %s10, 0
      %p42 = por %p40, %p41
      %p43 = scmp.ne.s32.totalorder %s32, %s35
      %p44 = scmp.eq.s32.totalorder %s15, 1
      %p45 = por %p43, %p44
      %p46 = scmp.ne.s32.totalorder %s35, %s36
      %p47 = scmp.eq.s32.totalorder %s15, 0
      %p48 = por %p46, %p47
      %p49 = scmp.ne.s32.totalorder %s35, %s36
      %p50 = scmp.eq.s32.totalorder %s16, 1
      %p51 = por %p49, %p50
      %p53 = scmp.ne.s32.totalorder %s36, %s52
      %p54 = scmp.eq.s32.totalorder %s16, 0
      %p55 = por %p53, %p54
      %s56 = ssub.s32 %s18, %s25
      %p57 = scmp.eq.s32.totalorder %s56, 0
      %s59 = sadd.s32 %s58, 1
      %s60 = scalar_select %p57, %s58, %s59
      %p63 = pneg %p57
      %p64 = scmp.eq.s32.totalorder %s10, 1
      %p65 = por %p63, %p64
      %p66 = scmp.ne.s32.totalorder %s58, %s61
      %p67 = scmp.eq.s32.totalorder %s10, 0
      %p68 = por %p66, %p67
      %p69 = scmp.ne.s32.totalorder %s58, %s61
      %p70 = scmp.eq.s32.totalorder %s15, 1
      %p71 = por %p69, %p70
      %p72 = scmp.ne.s32.totalorder %s61, %s62
      %p73 = scmp.eq.s32.totalorder %s15, 0
      %p74 = por %p72, %p73
      %p75 = scmp.ne.s32.totalorder %s61, %s62
      %p76 = scmp.eq.s32.totalorder %s16, 1
      %p77 = por %p75, %p76
      %p79 = scmp.ne.s32.totalorder %s62, %s78
      %p80 = scmp.eq.s32.totalorder %s16, 0
      %p81 = por %p79, %p80
      %s82 = ssub.s32 %s17, %s29
      %p83 = scmp.eq.s32.totalorder %s82, 0
      %s85 = sadd.s32 %s84, 1
      %s86 = scalar_select %p83, %s84, %s85
      %p89 = pneg %p83
      %p90 = scmp.eq.s32.totalorder %s10, 1
      %p91 = por %p89, %p90
      %p92 = scmp.ne.s32.totalorder %s84, %s87
      %p93 = scmp.eq.s32.totalorder %s10, 0
      %p94 = por %p92, %p93
      %p95 = scmp.ne.s32.totalorder %s84, %s87
      %p96 = scmp.eq.s32.totalorder %s15, 1
      %p97 = por %p95, %p96
      %p98 = scmp.ne.s32.totalorder %s87, %s88
      %p99 = scmp.eq.s32.totalorder %s15, 0
      %p100 = por %p98, %p99
      %p101 = scmp.ne.s32.totalorder %s87, %s88
      %p102 = scmp.eq.s32.totalorder %s16, 1
      %p103 = por %p101, %p102
      %p105 = scmp.ne.s32.totalorder %s88, %s104
      %p106 = scmp.eq.s32.totalorder %s16, 0
      %p107 = por %p105, %p106
      %s108 = ssub.s32 %s17, %s29
      %p109 = scmp.eq.s32.totalorder %s108, 0
      %s111 = sadd.s32 %s110, 1
      %s112 = scalar_select %p109, %s110, %s111
      %p115 = pneg %p109
      %p116 = scmp.eq.s32.totalorder %s10, 1
      %p117 = por %p115, %p116
      %p118 = scmp.ne.s32.totalorder %s110, %s113
      %p119 = scmp.eq.s32.totalorder %s10, 0
      %p120 = por %p118, %p119
      %p121 = scmp.ne.s32.totalorder %s110, %s113
      %p122 = scmp.eq.s32.totalorder %s15, 1
      %p123 = por %p121, %p122
      %p124 = scmp.ne.s32.totalorder %s113, %s114
      %p125 = scmp.eq.s32.totalorder %s15, 0
      %p126 = por %p124, %p125
      %p127 = scmp.ne.s32.totalorder %s113, %s114
      %p128 = scmp.eq.s32.totalorder %s16, 1
      %p129 = por %p127, %p128
      %p131 = scmp.ne.s32.totalorder %s114, %s130
      %p132 = scmp.eq.s32.totalorder %s16, 0
      %p133 = por %p131, %p132
      %p134 = scmp.le.s32.totalorder 1, %s10
      %p135 = scmp.lt.s32.totalorder %s10, 3
      %p136 = pnand %p134, %p135
      %p137 = pneg %p136
      // Predicated region
      $region9: #{tpu_custom_call.1} parent=5 // pred_check
        _
      $region10: #{tpu_custom_call.1} parent=5 // pred_check_branch
        %139 = sbr.rel (%p136) target = $region12
      $region11: #{tpu_custom_call.1} parent=5 // pred_region
        %s140 = ssub.s32 %s10, 1
        // Predicated region
        $region13: #{tpu_custom_call.1} parent=11 // pred_check
          %p141 = pneg %p48
        $region14: #{tpu_custom_call.1} parent=11 // pred_check_branch
          %143 = sbr.rel (%p141) target = $region16
        $region15: #{tpu_custom_call.1} parent=11 // pred_region
          %s144 = smul.u32 16, %s19
          %p145 = scmp.lt.s32.totalorder %s144, 15
          %s146 = scalar_select %p145, %s144, 15
          %s147 = smul.addr %s146, 4
          %s148 = scalar_lea.vmem %s0, %s147
          %s149 = smul.u32 16, %s19
        $region16: #{tpu_custom_call.1} parent=11 // pred_fallthru
          _
        // Predicated region
        $region17: #{tpu_custom_call.1} parent=11 // pred_check
          %p150 = pneg %p100
        $region18: #{tpu_custom_call.1} parent=11 // pred_check_branch
          %152 = sbr.rel (%p150) target = $region20
        $region19: #{tpu_custom_call.1} parent=11 // pred_region
          %s153 = smul.u32 16, %s19
          %p154 = scmp.lt.s32.totalorder %s153, 15
          %s155 = scalar_select %p154, %s153, 15
          %s156 = smul.addr %s155, 8
          %s157 = scalar_lea.vmem %s2, %s156
          %s158 = smul.u32 16, %s19
        $region20: #{tpu_custom_call.1} parent=11 // pred_fallthru
          _
      $region12: #{tpu_custom_call.1} parent=5 // pred_fallthru
        _
      %p159 = scmp.lt.s32.totalorder %s10, 2
      // Predicated region
      $region21: #{tpu_custom_call.1} parent=5 // pred_check
        %p160 = pneg %p159
      $region22: #{tpu_custom_call.1} parent=5 // pred_check_branch
        %162 = sbr.rel (%p160) target = $region24
      $region23: #{tpu_custom_call.1} parent=5 // pred_region
        // Predicated region
        $region25: #{tpu_custom_call.1} parent=23 // pred_check
          %p163 = pneg %p68
        $region26: #{tpu_custom_call.1} parent=23 // pred_check_branch
          %165 = sbr.rel (%p163) target = $region28
        $region27: #{tpu_custom_call.1} parent=23 // pred_region
          %s166 = sand.u32 %s58, 1
          %s167 = sand.u32 %s58, 1
          %s168 = smul.addr %s167, 16
          %s169 = scalar_lea.vmem [#allocation5], %s168
          %s170 = smul.addr %s18, 4
          %s171 = scalar_lea.vmem %s1, %s170
          // Predicated region
          $region29: #{tpu_custom_call.1} parent=27 // pred_check
            _
          $region30: #{tpu_custom_call.1} parent=27 // pred_check_branch
            %173 = sbr.rel (0) target = $region32
          $region31: #{tpu_custom_call.1} parent=27 // pred_region
            // Predicated region
            $region33: #{tpu_custom_call.1} parent=31 // pred_check
              _
            $region34: #{tpu_custom_call.1} parent=31 // pred_check_branch
              %175 = sbr.rel target = $region36
            $region35: #{tpu_custom_call.1} parent=31 // pred_region
              // Predicated region
              $region48: #{tpu_custom_call.1} parent=35 // pred_check
                _
              $region49: #{tpu_custom_call.1} parent=35 // pred_check_branch
                %197 = sbr.rel (0) target = $region51
              $region50: #{tpu_custom_call.1} parent=35 // pred_region
                loop: start=0, step=1, limit=1
                $region52: #{tpu_custom_call.1} parent=50 // loop_pre_header
                  _
                $region53: #{tpu_custom_call.1} parent=50 // loop_header
                  %s199 = sphi 0, %s203
                  %p200 = scmp.ge.s32.totalorder %s199, 1
                  %s204 = sphi %s171, %s171
                  %s205 = sphi %s169, %s169
                $region54: #{tpu_custom_call.1} parent=50 // loop_header_branch
                  %202 = sbr.rel (%p200) target = $region58
                $region55: #{tpu_custom_call.1} parent=50 // loop_body
                  _
                $region56: #{tpu_custom_call.1} parent=50 // loop_footer
                  %s203 = sadd.s32 1, %s199
                $region57: #{tpu_custom_call.1} parent=50 // loop_footer_branch
                  %198 = sbr.rel target = $region53
                $region58: #{tpu_custom_call.1} parent=50 // loop_exit
                  _
                %s207 = ssub.s32 16, 1
                loop: start=0, step=1, limit=1
                $region59: #{tpu_custom_call.1} parent=50 // loop_pre_header
                  _
                $region60: #{tpu_custom_call.1} parent=50 // loop_header
                  %s209 = sphi 0, %s213
                  %p210 = scmp.ge.s32.totalorder %s209, 1
                  %s214 = sphi %s171, %s171
                  %s215 = sphi %s169, %s169
                $region61: #{tpu_custom_call.1} parent=50 // loop_header_branch
                  %212 = sbr.rel (%p210) target = $region65
                $region62: #{tpu_custom_call.1} parent=50 // loop_body
                  %v216 = vld [vmem:[%s214] sm:%s207]
                  %217 = vst [vmem:[%s215] sm:%s207] %v216
                  %v218 = vld [vmem:[%s214 + $0x8] sm:%s207]
                  %219 = vst [vmem:[%s215 + $0x4] sm:%s207] %v218
                  %v220 = vld [vmem:[%s214 + $0x10] sm:%s207]
                  %221 = vst [vmem:[%s215 + $0x8] sm:%s207] %v220
                  %v222 = vld [vmem:[%s214 + $0x18] sm:%s207]
                  %223 = vst [vmem:[%s215 + $0xc] sm:%s207] %v222
                $region63: #{tpu_custom_call.1} parent=50 // loop_footer
                  %s213 = sadd.s32 1, %s209
                $region64: #{tpu_custom_call.1} parent=50 // loop_footer_branch
                  %208 = sbr.rel target = $region60
                $region65: #{tpu_custom_call.1} parent=50 // loop_exit
                  _
              $region51: #{tpu_custom_call.1} parent=35 // pred_fallthru
                _
            $region36: #{tpu_custom_call.1} parent=31 // pred_fallthru
              _
            // Predicated region
            $region37: #{tpu_custom_call.1} parent=31 // pred_check
              _
            $region38: #{tpu_custom_call.1} parent=31 // pred_check_branch
              %177 = sbr.rel (0) target = $region40
            $region39: #{tpu_custom_call.1} parent=31 // pred_region
              %s179 = ssub.s32 16, 1
              loop: start=0, step=1, limit=1
              $region41: #{tpu_custom_call.1} parent=39 // loop_pre_header
                _
              $region42: #{tpu_custom_call.1} parent=39 // loop_header
                %s181 = sphi 0, %s185
                %p182 = scmp.ge.s32.totalorder %s181, 1
                %s186 = sphi %s171, %s171
                %s187 = sphi %s169, %s169
              $region43: #{tpu_custom_call.1} parent=39 // loop_header_branch
                %184 = sbr.rel (%p182) target = $region47
              $region44: #{tpu_custom_call.1} parent=39 // loop_body
                %v188 = vld [vmem:[%s186] sm:%s179]
                %189 = vst [vmem:[%s187] sm:%s179] %v188
                %v190 = vld [vmem:[%s186 + $0x8] sm:%s179]
                %191 = vst [vmem:[%s187 + $0x4] sm:%s179] %v190
                %v192 = vld [vmem:[%s186 + $0x10] sm:%s179]
                %193 = vst [vmem:[%s187 + $0x8] sm:%s179] %v192
                %v194 = vld [vmem:[%s186 + $0x18] sm:%s179]
                %195 = vst [vmem:[%s187 + $0xc] sm:%s179] %v194
              $region45: #{tpu_custom_call.1} parent=39 // loop_footer
                %s185 = sadd.s32 1, %s181
              $region46: #{tpu_custom_call.1} parent=39 // loop_footer_branch
                %180 = sbr.rel target = $region42
              $region47: #{tpu_custom_call.1} parent=39 // loop_exit
                _
            $region40: #{tpu_custom_call.1} parent=31 // pred_fallthru
              _
          $region32: #{tpu_custom_call.1} parent=27 // pred_fallthru
            _
          %224 = vnop
        $region28: #{tpu_custom_call.1} parent=23 // pred_fallthru
          _
      $region24: #{tpu_custom_call.1} parent=5 // pred_fallthru
        _
      %p225 = scmp.le.s32.totalorder 1, %s10
      %p226 = scmp.lt.s32.totalorder %s10, 3
      %p227 = pnand %p225, %p226
      %p228 = pneg %p227
      // Predicated region
      $region66: #{tpu_custom_call.1} parent=5 // pred_check
        _
      $region67: #{tpu_custom_call.1} parent=5 // pred_check_branch
        %230 = sbr.rel (%p227) target = $region69
      $region68: #{tpu_custom_call.1} parent=5 // pred_region
        %s231 = ssub.s32 %s10, 1
        %s232 = sand.u32 %s61, 1
        %s233 = sand.u32 %s61, 1
        %s234 = smul.addr %s233, 16
        %s235 = scalar_lea.vmem [#allocation5], %s234
        // Predicated region
        $region70: #{tpu_custom_call.1} parent=68 // pred_check
          %p236 = pneg %p74
        $region71: #{tpu_custom_call.1} parent=68 // pred_check_branch
          %238 = sbr.rel (%p236) target = $region73
        $region72: #{tpu_custom_call.1} parent=68 // pred_region
          _
        $region73: #{tpu_custom_call.1} parent=68 // pred_fallthru
          _
        %s239 = smul.u32 16, %s19
        %p240 = scmp.lt.s32.totalorder %s239, 15
        %s241 = scalar_select %p240, %s239, 15
        %s242 = smul.addr %s241, 4
        %s243 = scalar_lea.vmem %s0, %s242
        %p244 = pneg %p48
        %p245 = pneg %p45
        %s246 = sand.u32 %s61, 1
        %s247 = sand.u32 %s61, 1
        %s248 = smul.addr %s247, 16
        %s249 = scalar_lea.vmem [#allocation5], %s248
        %p250 = pneg %p74
        %p251 = pneg %p71
        %s252 = smul.u32 16, %s19
        %p253 = scmp.lt.s32.totalorder %s252, 15
        %s254 = scalar_select %p253, %s252, 15
        %s255 = smul.addr %s254, 8
        %s256 = scalar_lea.vmem %s2, %s255
        %p257 = pneg %p100
        %p258 = pneg %p97
        %p259 = pneg %p126
        %p260 = pneg %p123
        %s261 = smul.u32 16, %s19
        %p262 = scmp.lt.s32.totalorder %s261, 15
        %s263 = scalar_select %p262, %s261, 15
        %s264 = smul.addr %s263, 4
        %s265 = scalar_lea.vmem %s0, %s264
        %s266 = smul.u32 16, %s19
        %s267 = smul.u32 16, %s19
        %p268 = scmp.lt.s32.totalorder %s267, 15
        %s269 = scalar_select %p268, %s267, 15
        %s270 = smul.addr %s269, 8
        %s271 = scalar_lea.vmem %s2, %s270
        %s272 = smul.u32 16, %s19
        %p274 = scmp.eq.s32.totalorder %s20, 0
        // Predicated region
        $region74: #{tpu_custom_call.1} parent=68 // pred_check
          %p275 = pneg %p274
        $region75: #{tpu_custom_call.1} parent=68 // pred_check_branch
          %277 = sbr.rel (%p275) target = $region77
        $region76: #{tpu_custom_call.1} parent=68 // pred_region
          %vm278 = vcmask 7168
          %279 = vst.msk [vmem:[#allocation2] sm:$0xff] %vm278, -inf
          %280 = vst.msk [vmem:[#allocation2 + $0x8] sm:$0xff] %vm278, -inf
          %281 = vst.msk [vmem:[#allocation2 + $0x10] sm:$0xff] %vm278, -inf
          %282 = vst.msk [vmem:[#allocation2 + $0x18] sm:$0xff] %vm278, -inf
          %283 = vst.msk [vmem:[#allocation2 + $0x20] sm:$0xff] %vm278, -inf
          %284 = vst.msk [vmem:[#allocation2 + $0x28] sm:$0xff] %vm278, -inf
          %285 = vst.msk [vmem:[#allocation2 + $0x30] sm:$0xff] %vm278, -inf
          %286 = vst.msk [vmem:[#allocation2 + $0x38] sm:$0xff] %vm278, -inf
          %287 = vst.msk [vmem:[#allocation2 + $0x40] sm:$0xff] %vm278, -inf
          %288 = vst.msk [vmem:[#allocation2 + $0x48] sm:$0xff] %vm278, -inf
          %289 = vst.msk [vmem:[#allocation2 + $0x50] sm:$0xff] %vm278, -inf
          %290 = vst.msk [vmem:[#allocation2 + $0x58] sm:$0xff] %vm278, -inf
          %291 = vst.msk [vmem:[#allocation2 + $0x60] sm:$0xff] %vm278, -inf
          %292 = vst.msk [vmem:[#allocation2 + $0x68] sm:$0xff] %vm278, -inf
          %293 = vst.msk [vmem:[#allocation2 + $0x70] sm:$0xff] %vm278, -inf
          %294 = vst.msk [vmem:[#allocation2 + $0x78] sm:$0xff] %vm278, -inf
          %295 = vst.msk [vmem:[#allocation3] sm:$0xff] %vm278, 0.0
          %296 = vst.msk [vmem:[#allocation3 + $0x8] sm:$0xff] %vm278, 0.0
          %297 = vst.msk [vmem:[#allocation3 + $0x10] sm:$0xff] %vm278, 0.0
          %298 = vst.msk [vmem:[#allocation3 + $0x18] sm:$0xff] %vm278, 0.0
          %299 = vst.msk [vmem:[#allocation3 + $0x20] sm:$0xff] %vm278, 0.0
          %300 = vst.msk [vmem:[#allocation3 + $0x28] sm:$0xff] %vm278, 0.0
          %301 = vst.msk [vmem:[#allocation3 + $0x30] sm:$0xff] %vm278, 0.0
          %302 = vst.msk [vmem:[#allocation3 + $0x38] sm:$0xff] %vm278, 0.0
          %303 = vst.msk [vmem:[#allocation3 + $0x40] sm:$0xff] %vm278, 0.0
          %304 = vst.msk [vmem:[#allocation3 + $0x48] sm:$0xff] %vm278, 0.0
          %305 = vst.msk [vmem:[#allocation3 + $0x50] sm:$0xff] %vm278, 0.0
          %306 = vst.msk [vmem:[#allocation3 + $0x58] sm:$0xff] %vm278, 0.0
          %307 = vst.msk [vmem:[#allocation3 + $0x60] sm:$0xff] %vm278, 0.0
          %308 = vst.msk [vmem:[#allocation3 + $0x68] sm:$0xff] %vm278, 0.0
          %309 = vst.msk [vmem:[#allocation3 + $0x70] sm:$0xff] %vm278, 0.0
          %310 = vst.msk [vmem:[#allocation3 + $0x78] sm:$0xff] %vm278, 0.0
          %311 = vst.msk [vmem:[#allocation4] sm:$0xff] %vm278, 0.0
          %312 = vst.msk [vmem:[#allocation4 + $0x8] sm:$0xff] %vm278, 0.0
          %313 = vst.msk [vmem:[#allocation4 + $0x10] sm:$0xff] %vm278, 0.0
          %314 = vst.msk [vmem:[#allocation4 + $0x18] sm:$0xff] %vm278, 0.0
          %315 = vst.msk [vmem:[#allocation4 + $0x20] sm:$0xff] %vm278, 0.0
          %316 = vst.msk [vmem:[#allocation4 + $0x28] sm:$0xff] %vm278, 0.0
          %317 = vst.msk [vmem:[#allocation4 + $0x30] sm:$0xff] %vm278, 0.0
          %318 = vst.msk [vmem:[#allocation4 + $0x38] sm:$0xff] %vm278, 0.0
          %319 = vst.msk [vmem:[#allocation4 + $0x40] sm:$0xff] %vm278, 0.0
          %320 = vst.msk [vmem:[#allocation4 + $0x48] sm:$0xff] %vm278, 0.0
          %321 = vst.msk [vmem:[#allocation4 + $0x50] sm:$0xff] %vm278, 0.0
          %322 = vst.msk [vmem:[#allocation4 + $0x58] sm:$0xff] %vm278, 0.0
          %323 = vst.msk [vmem:[#allocation4 + $0x60] sm:$0xff] %vm278, 0.0
          %324 = vst.msk [vmem:[#allocation4 + $0x68] sm:$0xff] %vm278, 0.0
          %325 = vst.msk [vmem:[#allocation4 + $0x70] sm:$0xff] %vm278, 0.0
          %326 = vst.msk [vmem:[#allocation4 + $0x78] sm:$0xff] %vm278, 0.0
        $region77: #{tpu_custom_call.1} parent=68 // pred_fallthru
          _
        %v327 = vld [vmem:[%s265] sm:$0xf]
        %v328 = vld [vmem:[%s265 + $0x4] sm:$0xf]
        %v329 = vld [vmem:[%s265 + $0x8] sm:$0xf]
        %v330 = vld [vmem:[%s265 + $0xc] sm:$0xf]
        %v331 = vld [vmem:[%s265 + $0x10] sm:$0xf]
        %v332 = vld [vmem:[%s265 + $0x14] sm:$0xf]
        %v333 = vld [vmem:[%s265 + $0x18] sm:$0xf]
        %v334 = vld [vmem:[%s265 + $0x1c] sm:$0xf]
        %v335 = vld [vmem:[%s265 + $0x20] sm:$0xf]
        %v336 = vld [vmem:[%s265 + $0x24] sm:$0xf]
        %v337 = vld [vmem:[%s265 + $0x28] sm:$0xf]
        %v338 = vld [vmem:[%s265 + $0x2c] sm:$0xf]
        %v339 = vld [vmem:[%s265 + $0x30] sm:$0xf]
        %v340 = vld [vmem:[%s265 + $0x34] sm:$0xf]
        %v341 = vld [vmem:[%s265 + $0x38] sm:$0xf]
        %v342 = vld [vmem:[%s265 + $0x3c] sm:$0xf]
        %v343 = vld [vmem:[%s235] sm:$0xf]
        %v344 = vld [vmem:[%s235 + $0x4] sm:$0xf]
        %v345 = vld [vmem:[%s235 + $0x8] sm:$0xf]
        %v346 = vld [vmem:[%s235 + $0xc] sm:$0xf]
        %v363 = vunpack.c.l.b16 %v327
        %v364 = vunpack.c.l.b16 %v328
        %v365 = vunpack.c.l.b16 %v329
        %v366 = vunpack.c.l.b16 %v330
        %v367 = vunpack.c.l.b16 %v331
        %v368 = vunpack.c.l.b16 %v332
        %v369 = vunpack.c.l.b16 %v333
        %v370 = vunpack.c.l.b16 %v334
        %v371 = vunpack.c.l.b16 %v335
        %v372 = vunpack.c.l.b16 %v336
        %v373 = vunpack.c.l.b16 %v337
        %v374 = vunpack.c.l.b16 %v338
        %v375 = vunpack.c.l.b16 %v339
        %v376 = vunpack.c.l.b16 %v340
        %v377 = vunpack.c.l.b16 %v341
        %v378 = vunpack.c.l.b16 %v342
        %v379 = vpack.c.b16 %v364, %v363
        %v380 = vpack.c.b16 %v366, %v365
        %v381 = vpack.c.b16 %v368, %v367
        %v382 = vpack.c.b16 %v370, %v369
        %v383 = vpack.c.b16 %v372, %v371
        %v384 = vpack.c.b16 %v374, %v373
        %v385 = vpack.c.b16 %v376, %v375
        %v386 = vpack.c.b16 %v378, %v377
        %v391 = vunpack.c.l.b16 %v343
        %v392 = vunpack.c.l.b16 %v344
        %v393 = vunpack.c.l.b16 %v345
        %v394 = vunpack.c.l.b16 %v346
        %v395 = vpack.c.b16 %v392, %v391
        %v396 = vpack.c.b16 %v394, %v393
        %vm399 = vcmask 261120
        %v401 = vsel %vm399, %v379, 0
        %v404 = vsel %vm399, %v380, 0
        %v407 = vsel %vm399, %v381, 0
        %v410 = vsel %vm399, %v382, 0
        %v413 = vsel %vm399, %v383, 0
        %v416 = vsel %vm399, %v384, 0
        %v419 = vsel %vm399, %v385, 0
        %v422 = vsel %vm399, %v386, 0
        %424 = vmatpush.bf16.msra.mxu0 0
        %425 = vmatpush.bf16.msra.mxu0 0
        %426 = vmatpush.bf16.msra.mxu0 0
        %427 = vmatpush.bf16.msra.mxu0 0
        %428 = vmatpush.bf16.msra.mxu0 0
        %429 = vmatpush.bf16.msra.mxu0 0
        %430 = vmatpush.bf16.msra.mxu0 %v396
        %431 = vmatpush.bf16.msra.mxu0 %v395
        %432 = vmatmul.bf16.gmra.mxu0 %v401
        %v433 = vpop.f32.mrf.mxu0
        %v434 = vadd.f32 0.0, %v433
        %v435 = vpop.f32.mrf.mxu0
        %v436 = vadd.f32 0.0, %v435
        %437 = vmatmul.bf16.gmra.mxu0 %v404
        %v438 = vpop.f32.mrf.mxu0
        %v439 = vadd.f32 0.0, %v438
        %v440 = vpop.f32.mrf.mxu0
        %v441 = vadd.f32 0.0, %v440
        %442 = vmatmul.bf16.gmra.mxu0 %v407
        %v443 = vpop.f32.mrf.mxu0
        %v444 = vadd.f32 0.0, %v443
        %v445 = vpop.f32.mrf.mxu0
        %v446 = vadd.f32 0.0, %v445
        %447 = vmatmul.bf16.gmra.mxu0 %v410
        %v448 = vpop.f32.mrf.mxu0
        %v449 = vadd.f32 0.0, %v448
        %v450 = vpop.f32.mrf.mxu0
        %v451 = vadd.f32 0.0, %v450
        %452 = vmatmul.bf16.gmra.mxu0 %v413
        %v453 = vpop.f32.mrf.mxu0
        %v454 = vadd.f32 0.0, %v453
        %v455 = vpop.f32.mrf.mxu0
        %v456 = vadd.f32 0.0, %v455
        %457 = vmatmul.bf16.gmra.mxu0 %v416
        %v458 = vpop.f32.mrf.mxu0
        %v459 = vadd.f32 0.0, %v458
        %v460 = vpop.f32.mrf.mxu0
        %v461 = vadd.f32 0.0, %v460
        %462 = vmatmul.bf16.gmra.mxu0 %v419
        %v463 = vpop.f32.mrf.mxu0
        %v464 = vadd.f32 0.0, %v463
        %v465 = vpop.f32.mrf.mxu0
        %v466 = vadd.f32 0.0, %v465
        %467 = vmatmul.bf16.gmra.mxu0 %v422
        %v468 = vpop.f32.mrf.mxu0
        %v469 = vadd.f32 0.0, %v468
        %v470 = vpop.f32.mrf.mxu0
        %v471 = vadd.f32 0.0, %v470
        %472 = vdwg.mxu0
        %v473 = vlaneseq
        %v474 = vand.u32 %v473, 127
        %s475 = smul.u32 %s20, 128
        %v476 = vstv %s475
        %v477 = vadd.s32 %v474, %v476
        %v478 = vld [vmem:[%s271] sm:$0xff]
        %v479 = vld [vmem:[%s271 + $0x8] sm:$0xff]
        %v480 = vld [vmem:[%s271 + $0x10] sm:$0xff]
        %v481 = vld [vmem:[%s271 + $0x18] sm:$0xff]
        %v482 = vld [vmem:[%s271 + $0x20] sm:$0xff]
        %v483 = vld [vmem:[%s271 + $0x28] sm:$0xff]
        %v484 = vld [vmem:[%s271 + $0x30] sm:$0xff]
        %v485 = vld [vmem:[%s271 + $0x38] sm:$0xff]
        %v486 = vld [vmem:[%s271 + $0x40] sm:$0xff]
        %v487 = vld [vmem:[%s271 + $0x48] sm:$0xff]
        %v488 = vld [vmem:[%s271 + $0x50] sm:$0xff]
        %v489 = vld [vmem:[%s271 + $0x58] sm:$0xff]
        %v490 = vld [vmem:[%s271 + $0x60] sm:$0xff]
        %v491 = vld [vmem:[%s271 + $0x68] sm:$0xff]
        %v492 = vld [vmem:[%s271 + $0x70] sm:$0xff]
        %v493 = vld [vmem:[%s271 + $0x78] sm:$0xff]
        %494 = vset.pattern.permute.xlu0 0
        %495 = vperm.xlu0 %494, %v478
        %v496 = vpop.permute.xlu0 %495
        %497 = vset.pattern.permute.xlu0 0
        %498 = vperm.xlu0 %497, %v479
        %v499 = vpop.permute.xlu0 %498
        %500 = vset.pattern.permute.xlu0 0
        %501 = vperm.xlu0 %500, %v480
        %v502 = vpop.permute.xlu0 %501
        %503 = vset.pattern.permute.xlu0 0
        %504 = vperm.xlu0 %503, %v481
        %v505 = vpop.permute.xlu0 %504
        %506 = vset.pattern.permute.xlu0 0
        %507 = vperm.xlu0 %506, %v482
        %v508 = vpop.permute.xlu0 %507
        %509 = vset.pattern.permute.xlu0 0
        %510 = vperm.xlu0 %509, %v483
        %v511 = vpop.permute.xlu0 %510
        %512 = vset.pattern.permute.xlu0 0
        %513 = vperm.xlu0 %512, %v484
        %v514 = vpop.permute.xlu0 %513
        %515 = vset.pattern.permute.xlu0 0
        %516 = vperm.xlu0 %515, %v485
        %v517 = vpop.permute.xlu0 %516
        %518 = vset.pattern.permute.xlu0 0
        %519 = vperm.xlu0 %518, %v486
        %v520 = vpop.permute.xlu0 %519
        %521 = vset.pattern.permute.xlu0 0
        %522 = vperm.xlu0 %521, %v487
        %v523 = vpop.permute.xlu0 %522
        %524 = vset.pattern.permute.xlu0 0
        %525 = vperm.xlu0 %524, %v488
        %v526 = vpop.permute.xlu0 %525
        %527 = vset.pattern.permute.xlu0 0
        %528 = vperm.xlu0 %527, %v489
        %v529 = vpop.permute.xlu0 %528
        %530 = vset.pattern.permute.xlu0 0
        %531 = vperm.xlu0 %530, %v490
        %v532 = vpop.permute.xlu0 %531
        %533 = vset.pattern.permute.xlu0 0
        %534 = vperm.xlu0 %533, %v491
        %v535 = vpop.permute.xlu0 %534
        %536 = vset.pattern.permute.xlu0 0
        %537 = vperm.xlu0 %536, %v492
        %v538 = vpop.permute.xlu0 %537
        %539 = vset.pattern.permute.xlu0 0
        %540 = vperm.xlu0 %539, %v493
        %v541 = vpop.permute.xlu0 %540
        %vm542 = vcmp.eq.s32.totalorder %v477, %v496
        %vm543 = vcmp.eq.s32.totalorder %v477, %v499
        %vm544 = vcmp.eq.s32.totalorder %v477, %v502
        %vm545 = vcmp.eq.s32.totalorder %v477, %v505
        %vm546 = vcmp.eq.s32.totalorder %v477, %v508
        %vm547 = vcmp.eq.s32.totalorder %v477, %v511
        %vm548 = vcmp.eq.s32.totalorder %v477, %v514
        %vm549 = vcmp.eq.s32.totalorder %v477, %v517
        %vm550 = vcmp.eq.s32.totalorder %v477, %v520
        %vm551 = vcmp.eq.s32.totalorder %v477, %v523
        %vm552 = vcmp.eq.s32.totalorder %v477, %v526
        %vm553 = vcmp.eq.s32.totalorder %v477, %v529
        %vm554 = vcmp.eq.s32.totalorder %v477, %v532
        %vm555 = vcmp.eq.s32.totalorder %v477, %v535
        %vm556 = vcmp.eq.s32.totalorder %v477, %v538
        %vm557 = vcmp.eq.s32.totalorder %v477, %v541
        %v558 = vld [vmem:[#allocation4] sm:$0xff]
        %v559 = vld [vmem:[#allocation4 + $0x8] sm:$0xff]
        %v560 = vld [vmem:[#allocation4 + $0x10] sm:$0xff]
        %v561 = vld [vmem:[#allocation4 + $0x18] sm:$0xff]
        %v562 = vld [vmem:[#allocation4 + $0x20] sm:$0xff]
        %v563 = vld [vmem:[#allocation4 + $0x28] sm:$0xff]
        %v564 = vld [vmem:[#allocation4 + $0x30] sm:$0xff]
        %v565 = vld [vmem:[#allocation4 + $0x38] sm:$0xff]
        %v566 = vld [vmem:[#allocation4 + $0x40] sm:$0xff]
        %v567 = vld [vmem:[#allocation4 + $0x48] sm:$0xff]
        %v568 = vld [vmem:[#allocation4 + $0x50] sm:$0xff]
        %v569 = vld [vmem:[#allocation4 + $0x58] sm:$0xff]
        %v570 = vld [vmem:[#allocation4 + $0x60] sm:$0xff]
        %v571 = vld [vmem:[#allocation4 + $0x68] sm:$0xff]
        %v572 = vld [vmem:[#allocation4 + $0x70] sm:$0xff]
        %v573 = vld [vmem:[#allocation4 + $0x78] sm:$0xff]
        %v574 = vsel %vm542, %v434, 0.0
        %v575 = vsel %vm543, %v436, 0.0
        %v576 = vsel %vm544, %v439, 0.0
        %v577 = vsel %vm545, %v441, 0.0
        %v578 = vsel %vm546, %v444, 0.0
        %v579 = vsel %vm547, %v446, 0.0
        %v580 = vsel %vm548, %v449, 0.0
        %v581 = vsel %vm549, %v451, 0.0
        %v582 = vsel %vm550, %v454, 0.0
        %v583 = vsel %vm551, %v456, 0.0
        %v584 = vsel %vm552, %v459, 0.0
        %v585 = vsel %vm553, %v461, 0.0
        %v586 = vsel %vm554, %v464, 0.0
        %v587 = vsel %vm555, %v466, 0.0
        %v588 = vsel %vm556, %v469, 0.0
        %v589 = vsel %vm557, %v471, 0.0
        %590 = vadd.xlane.f32.xlu0 %v574
        %v591 = vpop.xlane.xlu0 %590
        %592 = vadd.xlane.f32.xlu0 %v575
        %v593 = vpop.xlane.xlu0 %592
        %594 = vadd.xlane.f32.xlu0 %v576
        %v595 = vpop.xlane.xlu0 %594
        %596 = vadd.xlane.f32.xlu0 %v577
        %v597 = vpop.xlane.xlu0 %596
        %598 = vadd.xlane.f32.xlu0 %v578
        %v599 = vpop.xlane.xlu0 %598
        %600 = vadd.xlane.f32.xlu0 %v579
        %v601 = vpop.xlane.xlu0 %600
        %602 = vadd.xlane.f32.xlu0 %v580
        %v603 = vpop.xlane.xlu0 %602
        %604 = vadd.xlane.f32.xlu0 %v581
        %v605 = vpop.xlane.xlu0 %604
        %606 = vadd.xlane.f32.xlu0 %v582
        %v607 = vpop.xlane.xlu0 %606
        %608 = vadd.xlane.f32.xlu0 %v583
        %v609 = vpop.xlane.xlu0 %608
        %610 = vadd.xlane.f32.xlu0 %v584
        %v611 = vpop.xlane.xlu0 %610
        %612 = vadd.xlane.f32.xlu0 %v585
        %v613 = vpop.xlane.xlu0 %612
        %614 = vadd.xlane.f32.xlu0 %v586
        %v615 = vpop.xlane.xlu0 %614
        %616 = vadd.xlane.f32.xlu0 %v587
        %v617 = vpop.xlane.xlu0 %616
        %618 = vadd.xlane.f32.xlu0 %v588
        %v619 = vpop.xlane.xlu0 %618
        %620 = vadd.xlane.f32.xlu0 %v589
        %v621 = vpop.xlane.xlu0 %620
        %v622 = vadd.f32 %v558, %v591
        %v623 = vadd.f32 %v559, %v593
        %v624 = vadd.f32 %v560, %v595
        %v625 = vadd.f32 %v561, %v597
        %v626 = vadd.f32 %v562, %v599
        %v627 = vadd.f32 %v563, %v601
        %v628 = vadd.f32 %v564, %v603
        %v629 = vadd.f32 %v565, %v605
        %v630 = vadd.f32 %v566, %v607
        %v631 = vadd.f32 %v567, %v609
        %v632 = vadd.f32 %v568, %v611
        %v633 = vadd.f32 %v569, %v613
        %v634 = vadd.f32 %v570, %v615
        %v635 = vadd.f32 %v571, %v617
        %v636 = vadd.f32 %v572, %v619
        %v637 = vadd.f32 %v573, %v621
        %vm638 = vcmask 7168
        %639 = vst.msk [vmem:[#allocation4] sm:$0xff] %vm638, %v622
        %640 = vst.msk [vmem:[#allocation4 + $0x8] sm:$0xff] %vm638, %v623
        %641 = vst.msk [vmem:[#allocation4 + $0x10] sm:$0xff] %vm638, %v624
        %642 = vst.msk [vmem:[#allocation4 + $0x18] sm:$0xff] %vm638, %v625
        %643 = vst.msk [vmem:[#allocation4 + $0x20] sm:$0xff] %vm638, %v626
        %644 = vst.msk [vmem:[#allocation4 + $0x28] sm:$0xff] %vm638, %v627
        %645 = vst.msk [vmem:[#allocation4 + $0x30] sm:$0xff] %vm638, %v628
        %646 = vst.msk [vmem:[#allocation4 + $0x38] sm:$0xff] %vm638, %v629
        %647 = vst.msk [vmem:[#allocation4 + $0x40] sm:$0xff] %vm638, %v630
        %648 = vst.msk [vmem:[#allocation4 + $0x48] sm:$0xff] %vm638, %v631
        %649 = vst.msk [vmem:[#allocation4 + $0x50] sm:$0xff] %vm638, %v632
        %650 = vst.msk [vmem:[#allocation4 + $0x58] sm:$0xff] %vm638, %v633
        %651 = vst.msk [vmem:[#allocation4 + $0x60] sm:$0xff] %vm638, %v634
        %652 = vst.msk [vmem:[#allocation4 + $0x68] sm:$0xff] %vm638, %v635
        %653 = vst.msk [vmem:[#allocation4 + $0x70] sm:$0xff] %vm638, %v636
        %654 = vst.msk [vmem:[#allocation4 + $0x78] sm:$0xff] %vm638, %v637
        %v655 = vld [vmem:[#allocation2] sm:$0xff]
        %v656 = vld [vmem:[#allocation2 + $0x8] sm:$0xff]
        %v657 = vld [vmem:[#allocation2 + $0x10] sm:$0xff]
        %v658 = vld [vmem:[#allocation2 + $0x18] sm:$0xff]
        %v659 = vld [vmem:[#allocation2 + $0x20] sm:$0xff]
        %v660 = vld [vmem:[#allocation2 + $0x28] sm:$0xff]
        %v661 = vld [vmem:[#allocation2 + $0x30] sm:$0xff]
        %v662 = vld [vmem:[#allocation2 + $0x38] sm:$0xff]
        %v663 = vld [vmem:[#allocation2 + $0x40] sm:$0xff]
        %v664 = vld [vmem:[#allocation2 + $0x48] sm:$0xff]
        %v665 = vld [vmem:[#allocation2 + $0x50] sm:$0xff]
        %v666 = vld [vmem:[#allocation2 + $0x58] sm:$0xff]
        %v667 = vld [vmem:[#allocation2 + $0x60] sm:$0xff]
        %v668 = vld [vmem:[#allocation2 + $0x68] sm:$0xff]
        %v669 = vld [vmem:[#allocation2 + $0x70] sm:$0xff]
        %v670 = vld [vmem:[#allocation2 + $0x78] sm:$0xff]
        %671 = vmax.xlane.f32.xlu0 %v434
        %v672 = vpop.xlane.xlu0 %671
        %673 = vmax.xlane.f32.xlu0 %v436
        %v674 = vpop.xlane.xlu0 %673
        %675 = vmax.xlane.f32.xlu0 %v439
        %v676 = vpop.xlane.xlu0 %675
        %677 = vmax.xlane.f32.xlu0 %v441
        %v678 = vpop.xlane.xlu0 %677
        %679 = vmax.xlane.f32.xlu0 %v444
        %v680 = vpop.xlane.xlu0 %679
        %681 = vmax.xlane.f32.xlu0 %v446
        %v682 = vpop.xlane.xlu0 %681
        %683 = vmax.xlane.f32.xlu0 %v449
        %v684 = vpop.xlane.xlu0 %683
        %685 = vmax.xlane.f32.xlu0 %v451
        %v686 = vpop.xlane.xlu0 %685
        %687 = vmax.xlane.f32.xlu0 %v454
        %v688 = vpop.xlane.xlu0 %687
        %689 = vmax.xlane.f32.xlu0 %v456
        %v690 = vpop.xlane.xlu0 %689
        %691 = vmax.xlane.f32.xlu0 %v459
        %v692 = vpop.xlane.xlu0 %691
        %693 = vmax.xlane.f32.xlu0 %v461
        %v694 = vpop.xlane.xlu0 %693
        %695 = vmax.xlane.f32.xlu0 %v464
        %v696 = vpop.xlane.xlu0 %695
        %697 = vmax.xlane.f32.xlu0 %v466
        %v698 = vpop.xlane.xlu0 %697
        %699 = vmax.xlane.f32.xlu0 %v469
        %v700 = vpop.xlane.xlu0 %699
        %701 = vmax.xlane.f32.xlu0 %v471
        %v702 = vpop.xlane.xlu0 %701
        %v703 = vmax.f32 %v655, %v672
        %v704 = vmax.f32 %v656, %v674
        %v705 = vmax.f32 %v657, %v676
        %v706 = vmax.f32 %v658, %v678
        %v707 = vmax.f32 %v659, %v680
        %v708 = vmax.f32 %v660, %v682
        %v709 = vmax.f32 %v661, %v684
        %v710 = vmax.f32 %v662, %v686
        %v711 = vmax.f32 %v663, %v688
        %v712 = vmax.f32 %v664, %v690
        %v713 = vmax.f32 %v665, %v692
        %v714 = vmax.f32 %v666, %v694
        %v715 = vmax.f32 %v667, %v696
        %v716 = vmax.f32 %v668, %v698
        %v717 = vmax.f32 %v669, %v700
        %v718 = vmax.f32 %v670, %v702
        %v719 = vsub.f32 %v655, %v703
        %v720 = vsub.f32 %v656, %v704
        %v721 = vsub.f32 %v657, %v705
        %v722 = vsub.f32 %v658, %v706
        %v723 = vsub.f32 %v659, %v707
        %v724 = vsub.f32 %v660, %v708
        %v725 = vsub.f32 %v661, %v709
        %v726 = vsub.f32 %v662, %v710
        %v727 = vsub.f32 %v663, %v711
        %v728 = vsub.f32 %v664, %v712
        %v729 = vsub.f32 %v665, %v713
        %v730 = vsub.f32 %v666, %v714
        %v731 = vsub.f32 %v667, %v715
        %v732 = vsub.f32 %v668, %v716
        %v733 = vsub.f32 %v669, %v717
        %v734 = vsub.f32 %v670, %v718
        %v735 = vmul.f32 %v719, 1.442695
        %v736 = vpow.pop %v735
        %v737 = vmul.f32 %v720, 1.442695
        %v738 = vpow.pop %v737
        %v739 = vmul.f32 %v721, 1.442695
        %v740 = vpow.pop %v739
        %v741 = vmul.f32 %v722, 1.442695
        %v742 = vpow.pop %v741
        %v743 = vmul.f32 %v723, 1.442695
        %v744 = vpow.pop %v743
        %v745 = vmul.f32 %v724, 1.442695
        %v746 = vpow.pop %v745
        %v747 = vmul.f32 %v725, 1.442695
        %v748 = vpow.pop %v747
        %v749 = vmul.f32 %v726, 1.442695
        %v750 = vpow.pop %v749
        %v751 = vmul.f32 %v727, 1.442695
        %v752 = vpow.pop %v751
        %v753 = vmul.f32 %v728, 1.442695
        %v754 = vpow.pop %v753
        %v755 = vmul.f32 %v729, 1.442695
        %v756 = vpow.pop %v755
        %v757 = vmul.f32 %v730, 1.442695
        %v758 = vpow.pop %v757
        %v759 = vmul.f32 %v731, 1.442695
        %v760 = vpow.pop %v759
        %v761 = vmul.f32 %v732, 1.442695
        %v762 = vpow.pop %v761
        %v763 = vmul.f32 %v733, 1.442695
        %v764 = vpow.pop %v763
        %v765 = vmul.f32 %v734, 1.442695
        %v766 = vpow.pop %v765
        %v767 = vld [vmem:[#allocation3] sm:$0xff]
        %v768 = vld [vmem:[#allocation3 + $0x8] sm:$0xff]
        %v769 = vld [vmem:[#allocation3 + $0x10] sm:$0xff]
        %v770 = vld [vmem:[#allocation3 + $0x18] sm:$0xff]
        %v771 = vld [vmem:[#allocation3 + $0x20] sm:$0xff]
        %v772 = vld [vmem:[#allocation3 + $0x28] sm:$0xff]
        %v773 = vld [vmem:[#allocation3 + $0x30] sm:$0xff]
        %v774 = vld [vmem:[#allocation3 + $0x38] sm:$0xff]
        %v775 = vld [vmem:[#allocation3 + $0x40] sm:$0xff]
        %v776 = vld [vmem:[#allocation3 + $0x48] sm:$0xff]
        %v777 = vld [vmem:[#allocation3 + $0x50] sm:$0xff]
        %v778 = vld [vmem:[#allocation3 + $0x58] sm:$0xff]
        %v779 = vld [vmem:[#allocation3 + $0x60] sm:$0xff]
        %v780 = vld [vmem:[#allocation3 + $0x68] sm:$0xff]
        %v781 = vld [vmem:[#allocation3 + $0x70] sm:$0xff]
        %v782 = vld [vmem:[#allocation3 + $0x78] sm:$0xff]
        %v783 = vmul.f32 %v736, %v767
        %v784 = vmul.f32 %v738, %v768
        %v785 = vmul.f32 %v740, %v769
        %v786 = vmul.f32 %v742, %v770
        %v787 = vmul.f32 %v744, %v771
        %v788 = vmul.f32 %v746, %v772
        %v789 = vmul.f32 %v748, %v773
        %v790 = vmul.f32 %v750, %v774
        %v791 = vmul.f32 %v752, %v775
        %v792 = vmul.f32 %v754, %v776
        %v793 = vmul.f32 %v756, %v777
        %v794 = vmul.f32 %v758, %v778
        %v795 = vmul.f32 %v760, %v779
        %v796 = vmul.f32 %v762, %v780
        %v797 = vmul.f32 %v764, %v781
        %v798 = vmul.f32 %v766, %v782
        %800 = vset.pattern.permute.xlu0 0
        %801 = vperm.xlu0 %800, %v703
        %v802 = vpop.permute.xlu0 %801
        %805 = vset.pattern.permute.xlu0 0
        %806 = vperm.xlu0 %805, %v704
        %v807 = vpop.permute.xlu0 %806
        %810 = vset.pattern.permute.xlu0 0
        %811 = vperm.xlu0 %810, %v705
        %v812 = vpop.permute.xlu0 %811
        %815 = vset.pattern.permute.xlu0 0
        %816 = vperm.xlu0 %815, %v706
        %v817 = vpop.permute.xlu0 %816
        %820 = vset.pattern.permute.xlu0 0
        %821 = vperm.xlu0 %820, %v707
        %v822 = vpop.permute.xlu0 %821
        %825 = vset.pattern.permute.xlu0 0
        %826 = vperm.xlu0 %825, %v708
        %v827 = vpop.permute.xlu0 %826
        %830 = vset.pattern.permute.xlu0 0
        %831 = vperm.xlu0 %830, %v709
        %v832 = vpop.permute.xlu0 %831
        %835 = vset.pattern.permute.xlu0 0
        %836 = vperm.xlu0 %835, %v710
        %v837 = vpop.permute.xlu0 %836
        %840 = vset.pattern.permute.xlu0 0
        %841 = vperm.xlu0 %840, %v711
        %v842 = vpop.permute.xlu0 %841
        %845 = vset.pattern.permute.xlu0 0
        %846 = vperm.xlu0 %845, %v712
        %v847 = vpop.permute.xlu0 %846
        %850 = vset.pattern.permute.xlu0 0
        %851 = vperm.xlu0 %850, %v713
        %v852 = vpop.permute.xlu0 %851
        %855 = vset.pattern.permute.xlu0 0
        %856 = vperm.xlu0 %855, %v714
        %v857 = vpop.permute.xlu0 %856
        %860 = vset.pattern.permute.xlu0 0
        %861 = vperm.xlu0 %860, %v715
        %v862 = vpop.permute.xlu0 %861
        %865 = vset.pattern.permute.xlu0 0
        %866 = vperm.xlu0 %865, %v716
        %v867 = vpop.permute.xlu0 %866
        %870 = vset.pattern.permute.xlu0 0
        %871 = vperm.xlu0 %870, %v717
        %v872 = vpop.permute.xlu0 %871
        %875 = vset.pattern.permute.xlu0 0
        %876 = vperm.xlu0 %875, %v718
        %v877 = vpop.permute.xlu0 %876
        %v879 = vsub.f32 %v434, %v802
        %v880 = vsub.f32 %v436, %v807
        %v881 = vsub.f32 %v439, %v812
        %v882 = vsub.f32 %v441, %v817
        %v883 = vsub.f32 %v444, %v822
        %v884 = vsub.f32 %v446, %v827
        %v885 = vsub.f32 %v449, %v832
        %v886 = vsub.f32 %v451, %v837
        %v887 = vsub.f32 %v454, %v842
        %v888 = vsub.f32 %v456, %v847
        %v889 = vsub.f32 %v459, %v852
        %v890 = vsub.f32 %v461, %v857
        %v891 = vsub.f32 %v464, %v862
        %v892 = vsub.f32 %v466, %v867
        %v893 = vsub.f32 %v469, %v872
        %v894 = vsub.f32 %v471, %v877
        %v895 = vmul.f32 %v879, 1.442695
        %v896 = vpow.pop %v895
        %v897 = vmul.f32 %v880, 1.442695
        %v898 = vpow.pop %v897
        %v899 = vmul.f32 %v881, 1.442695
        %v900 = vpow.pop %v899
        %v901 = vmul.f32 %v882, 1.442695
        %v902 = vpow.pop %v901
        %v903 = vmul.f32 %v883, 1.442695
        %v904 = vpow.pop %v903
        %v905 = vmul.f32 %v884, 1.442695
        %v906 = vpow.pop %v905
        %v907 = vmul.f32 %v885, 1.442695
        %v908 = vpow.pop %v907
        %v909 = vmul.f32 %v886, 1.442695
        %v910 = vpow.pop %v909
        %v911 = vmul.f32 %v887, 1.442695
        %v912 = vpow.pop %v911
        %v913 = vmul.f32 %v888, 1.442695
        %v914 = vpow.pop %v913
        %v915 = vmul.f32 %v889, 1.442695
        %v916 = vpow.pop %v915
        %v917 = vmul.f32 %v890, 1.442695
        %v918 = vpow.pop %v917
        %v919 = vmul.f32 %v891, 1.442695
        %v920 = vpow.pop %v919
        %v921 = vmul.f32 %v892, 1.442695
        %v922 = vpow.pop %v921
        %v923 = vmul.f32 %v893, 1.442695
        %v924 = vpow.pop %v923
        %v925 = vmul.f32 %v894, 1.442695
        %v926 = vpow.pop %v925
        %927 = vadd.xlane.f32.xlu0 %v896
        %v928 = vpop.xlane.xlu0 %927
        %929 = vadd.xlane.f32.xlu0 %v898
        %v930 = vpop.xlane.xlu0 %929
        %931 = vadd.xlane.f32.xlu0 %v900
        %v932 = vpop.xlane.xlu0 %931
        %933 = vadd.xlane.f32.xlu0 %v902
        %v934 = vpop.xlane.xlu0 %933
        %935 = vadd.xlane.f32.xlu0 %v904
        %v936 = vpop.xlane.xlu0 %935
        %937 = vadd.xlane.f32.xlu0 %v906
        %v938 = vpop.xlane.xlu0 %937
        %939 = vadd.xlane.f32.xlu0 %v908
        %v940 = vpop.xlane.xlu0 %939
        %941 = vadd.xlane.f32.xlu0 %v910
        %v942 = vpop.xlane.xlu0 %941
        %943 = vadd.xlane.f32.xlu0 %v912
        %v944 = vpop.xlane.xlu0 %943
        %945 = vadd.xlane.f32.xlu0 %v914
        %v946 = vpop.xlane.xlu0 %945
        %947 = vadd.xlane.f32.xlu0 %v916
        %v948 = vpop.xlane.xlu0 %947
        %949 = vadd.xlane.f32.xlu0 %v918
        %v950 = vpop.xlane.xlu0 %949
        %951 = vadd.xlane.f32.xlu0 %v920
        %v952 = vpop.xlane.xlu0 %951
        %953 = vadd.xlane.f32.xlu0 %v922
        %v954 = vpop.xlane.xlu0 %953
        %955 = vadd.xlane.f32.xlu0 %v924
        %v956 = vpop.xlane.xlu0 %955
        %957 = vadd.xlane.f32.xlu0 %v926
        %v958 = vpop.xlane.xlu0 %957
        %v959 = vadd.f32 %v783, %v928
        %v960 = vadd.f32 %v784, %v930
        %v961 = vadd.f32 %v785, %v932
        %v962 = vadd.f32 %v786, %v934
        %v963 = vadd.f32 %v787, %v936
        %v964 = vadd.f32 %v788, %v938
        %v965 = vadd.f32 %v789, %v940
        %v966 = vadd.f32 %v790, %v942
        %v967 = vadd.f32 %v791, %v944
        %v968 = vadd.f32 %v792, %v946
        %v969 = vadd.f32 %v793, %v948
        %v970 = vadd.f32 %v794, %v950
        %v971 = vadd.f32 %v795, %v952
        %v972 = vadd.f32 %v796, %v954
        %v973 = vadd.f32 %v797, %v956
        %v974 = vadd.f32 %v798, %v958
        %975 = vst.msk [vmem:[#allocation3] sm:$0xff] %vm638, %v959
        %976 = vst.msk [vmem:[#allocation3 + $0x8] sm:$0xff] %vm638, %v960
        %977 = vst.msk [vmem:[#allocation3 + $0x10] sm:$0xff] %vm638, %v961
        %978 = vst.msk [vmem:[#allocation3 + $0x18] sm:$0xff] %vm638, %v962
        %979 = vst.msk [vmem:[#allocation3 + $0x20] sm:$0xff] %vm638, %v963
        %980 = vst.msk [vmem:[#allocation3 + $0x28] sm:$0xff] %vm638, %v964
        %981 = vst.msk [vmem:[#allocation3 + $0x30] sm:$0xff] %vm638, %v965
        %982 = vst.msk [vmem:[#allocation3 + $0x38] sm:$0xff] %vm638, %v966
        %983 = vst.msk [vmem:[#allocation3 + $0x40] sm:$0xff] %vm638, %v967
        %984 = vst.msk [vmem:[#allocation3 + $0x48] sm:$0xff] %vm638, %v968
        %985 = vst.msk [vmem:[#allocation3 + $0x50] sm:$0xff] %vm638, %v969
        %986 = vst.msk [vmem:[#allocation3 + $0x58] sm:$0xff] %vm638, %v970
        %987 = vst.msk [vmem:[#allocation3 + $0x60] sm:$0xff] %vm638, %v971
        %988 = vst.msk [vmem:[#allocation3 + $0x68] sm:$0xff] %vm638, %v972
        %989 = vst.msk [vmem:[#allocation3 + $0x70] sm:$0xff] %vm638, %v973
        %990 = vst.msk [vmem:[#allocation3 + $0x78] sm:$0xff] %vm638, %v974
        %991 = vst.msk [vmem:[#allocation2] sm:$0xff] %vm638, %v703
        %992 = vst.msk [vmem:[#allocation2 + $0x8] sm:$0xff] %vm638, %v704
        %993 = vst.msk [vmem:[#allocation2 + $0x10] sm:$0xff] %vm638, %v705
        %994 = vst.msk [vmem:[#allocation2 + $0x18] sm:$0xff] %vm638, %v706
        %995 = vst.msk [vmem:[#allocation2 + $0x20] sm:$0xff] %vm638, %v707
        %996 = vst.msk [vmem:[#allocation2 + $0x28] sm:$0xff] %vm638, %v708
        %997 = vst.msk [vmem:[#allocation2 + $0x30] sm:$0xff] %vm638, %v709
        %998 = vst.msk [vmem:[#allocation2 + $0x38] sm:$0xff] %vm638, %v710
        %999 = vst.msk [vmem:[#allocation2 + $0x40] sm:$0xff] %vm638, %v711
        %1000 = vst.msk [vmem:[#allocation2 + $0x48] sm:$0xff] %vm638, %v712
        %1001 = vst.msk [vmem:[#allocation2 + $0x50] sm:$0xff] %vm638, %v713
        %1002 = vst.msk [vmem:[#allocation2 + $0x58] sm:$0xff] %vm638, %v714
        %1003 = vst.msk [vmem:[#allocation2 + $0x60] sm:$0xff] %vm638, %v715
        %1004 = vst.msk [vmem:[#allocation2 + $0x68] sm:$0xff] %vm638, %v716
        %1005 = vst.msk [vmem:[#allocation2 + $0x70] sm:$0xff] %vm638, %v717
        %1006 = vst.msk [vmem:[#allocation2 + $0x78] sm:$0xff] %vm638, %v718
        %p1007 = scmp.eq.s32.totalorder %s20, 1
        // Predicated region
        $region78: #{tpu_custom_call.1} parent=68 // pred_check
          %p1008 = pneg %p1007
        $region79: #{tpu_custom_call.1} parent=68 // pred_check_branch
          %1010 = sbr.rel (%p1008) target = $region81
        $region80: #{tpu_custom_call.1} parent=68 // pred_region
          %v1011 = vld [vmem:[#allocation4] sm:$0xff]
          %v1012 = vld [vmem:[#allocation4 + $0x8] sm:$0xff]
          %v1013 = vld [vmem:[#allocation4 + $0x10] sm:$0xff]
          %v1014 = vld [vmem:[#allocation4 + $0x18] sm:$0xff]
          %v1015 = vld [vmem:[#allocation4 + $0x20] sm:$0xff]
          %v1016 = vld [vmem:[#allocation4 + $0x28] sm:$0xff]
          %v1017 = vld [vmem:[#allocation4 + $0x30] sm:$0xff]
          %v1018 = vld [vmem:[#allocation4 + $0x38] sm:$0xff]
          %v1019 = vld [vmem:[#allocation4 + $0x40] sm:$0xff]
          %v1020 = vld [vmem:[#allocation4 + $0x48] sm:$0xff]
          %v1021 = vld [vmem:[#allocation4 + $0x50] sm:$0xff]
          %v1022 = vld [vmem:[#allocation4 + $0x58] sm:$0xff]
          %v1023 = vld [vmem:[#allocation4 + $0x60] sm:$0xff]
          %v1024 = vld [vmem:[#allocation4 + $0x68] sm:$0xff]
          %v1025 = vld [vmem:[#allocation4 + $0x70] sm:$0xff]
          %v1026 = vld [vmem:[#allocation4 + $0x78] sm:$0xff]
          %v1027 = vld [vmem:[#allocation2] sm:$0xff]
          %v1028 = vld [vmem:[#allocation2 + $0x8] sm:$0xff]
          %v1029 = vld [vmem:[#allocation2 + $0x10] sm:$0xff]
          %v1030 = vld [vmem:[#allocation2 + $0x18] sm:$0xff]
          %v1031 = vld [vmem:[#allocation2 + $0x20] sm:$0xff]
          %v1032 = vld [vmem:[#allocation2 + $0x28] sm:$0xff]
          %v1033 = vld [vmem:[#allocation2 + $0x30] sm:$0xff]
          %v1034 = vld [vmem:[#allocation2 + $0x38] sm:$0xff]
          %v1035 = vld [vmem:[#allocation2 + $0x40] sm:$0xff]
          %v1036 = vld [vmem:[#allocation2 + $0x48] sm:$0xff]
          %v1037 = vld [vmem:[#allocation2 + $0x50] sm:$0xff]
          %v1038 = vld [vmem:[#allocation2 + $0x58] sm:$0xff]
          %v1039 = vld [vmem:[#allocation2 + $0x60] sm:$0xff]
          %v1040 = vld [vmem:[#allocation2 + $0x68] sm:$0xff]
          %v1041 = vld [vmem:[#allocation2 + $0x70] sm:$0xff]
          %v1042 = vld [vmem:[#allocation2 + $0x78] sm:$0xff]
          %v1043 = vld [vmem:[#allocation3] sm:$0xff]
          %v1044 = vld [vmem:[#allocation3 + $0x8] sm:$0xff]
          %v1045 = vld [vmem:[#allocation3 + $0x10] sm:$0xff]
          %v1046 = vld [vmem:[#allocation3 + $0x18] sm:$0xff]
          %v1047 = vld [vmem:[#allocation3 + $0x20] sm:$0xff]
          %v1048 = vld [vmem:[#allocation3 + $0x28] sm:$0xff]
          %v1049 = vld [vmem:[#allocation3 + $0x30] sm:$0xff]
          %v1050 = vld [vmem:[#allocation3 + $0x38] sm:$0xff]
          %v1051 = vld [vmem:[#allocation3 + $0x40] sm:$0xff]
          %v1052 = vld [vmem:[#allocation3 + $0x48] sm:$0xff]
          %v1053 = vld [vmem:[#allocation3 + $0x50] sm:$0xff]
          %v1054 = vld [vmem:[#allocation3 + $0x58] sm:$0xff]
          %v1055 = vld [vmem:[#allocation3 + $0x60] sm:$0xff]
          %v1056 = vld [vmem:[#allocation3 + $0x68] sm:$0xff]
          %v1057 = vld [vmem:[#allocation3 + $0x70] sm:$0xff]
          %v1058 = vld [vmem:[#allocation3 + $0x78] sm:$0xff]
          %v1059 = vlog2.pop %v1043
          %v1060 = vmul.f32 %v1059, 0.6931472
          %v1061 = vlog2.pop %v1044
          %v1062 = vmul.f32 %v1061, 0.6931472
          %v1063 = vlog2.pop %v1045
          %v1064 = vmul.f32 %v1063, 0.6931472
          %v1065 = vlog2.pop %v1046
          %v1066 = vmul.f32 %v1065, 0.6931472
          %v1067 = vlog2.pop %v1047
          %v1068 = vmul.f32 %v1067, 0.6931472
          %v1069 = vlog2.pop %v1048
          %v1070 = vmul.f32 %v1069, 0.6931472
          %v1071 = vlog2.pop %v1049
          %v1072 = vmul.f32 %v1071, 0.6931472
          %v1073 = vlog2.pop %v1050
          %v1074 = vmul.f32 %v1073, 0.6931472
          %v1075 = vlog2.pop %v1051
          %v1076 = vmul.f32 %v1075, 0.6931472
          %v1077 = vlog2.pop %v1052
          %v1078 = vmul.f32 %v1077, 0.6931472
          %v1079 = vlog2.pop %v1053
          %v1080 = vmul.f32 %v1079, 0.6931472
          %v1081 = vlog2.pop %v1054
          %v1082 = vmul.f32 %v1081, 0.6931472
          %v1083 = vlog2.pop %v1055
          %v1084 = vmul.f32 %v1083, 0.6931472
          %v1085 = vlog2.pop %v1056
          %v1086 = vmul.f32 %v1085, 0.6931472
          %v1087 = vlog2.pop %v1057
          %v1088 = vmul.f32 %v1087, 0.6931472
          %v1089 = vlog2.pop %v1058
          %v1090 = vmul.f32 %v1089, 0.6931472
          %v1091 = vadd.f32 %v1027, %v1060
          %v1092 = vadd.f32 %v1028, %v1062
          %v1093 = vadd.f32 %v1029, %v1064
          %v1094 = vadd.f32 %v1030, %v1066
          %v1095 = vadd.f32 %v1031, %v1068
          %v1096 = vadd.f32 %v1032, %v1070
          %v1097 = vadd.f32 %v1033, %v1072
          %v1098 = vadd.f32 %v1034, %v1074
          %v1099 = vadd.f32 %v1035, %v1076
          %v1100 = vadd.f32 %v1036, %v1078
          %v1101 = vadd.f32 %v1037, %v1080
          %v1102 = vadd.f32 %v1038, %v1082
          %v1103 = vadd.f32 %v1039, %v1084
          %v1104 = vadd.f32 %v1040, %v1086
          %v1105 = vadd.f32 %v1041, %v1088
          %v1106 = vadd.f32 %v1042, %v1090
          %v1107 = vsub.f32 %v1011, %v1091
          %v1108 = vsub.f32 %v1012, %v1092
          %v1109 = vsub.f32 %v1013, %v1093
          %v1110 = vsub.f32 %v1014, %v1094
          %v1111 = vsub.f32 %v1015, %v1095
          %v1112 = vsub.f32 %v1016, %v1096
          %v1113 = vsub.f32 %v1017, %v1097
          %v1114 = vsub.f32 %v1018, %v1098
          %v1115 = vsub.f32 %v1019, %v1099
          %v1116 = vsub.f32 %v1020, %v1100
          %v1117 = vsub.f32 %v1021, %v1101
          %v1118 = vsub.f32 %v1022, %v1102
          %v1119 = vsub.f32 %v1023, %v1103
          %v1120 = vsub.f32 %v1024, %v1104
          %v1121 = vsub.f32 %v1025, %v1105
          %v1122 = vsub.f32 %v1026, %v1106
          %v1123 = vlaneseq
          %v1124 = vshrl.u32 %v1123, 7
          %v1125 = vadd.s32 %v1124, 8
          %v1126 = vadd.s32 %v1124, 16
          %v1127 = vadd.s32 %v1124, 24
          %v1128 = vadd.s32 %v1124, 32
          %v1129 = vadd.s32 %v1124, 40
          %v1130 = vadd.s32 %v1124, 48
          %v1131 = vadd.s32 %v1124, 56
          %v1132 = vadd.s32 %v1124, 64
          %v1133 = vadd.s32 %v1124, 72
          %v1134 = vadd.s32 %v1124, 80
          %v1135 = vadd.s32 %v1124, 88
          %v1136 = vadd.s32 %v1124, 96
          %v1137 = vadd.s32 %v1124, 104
          %v1138 = vadd.s32 %v1124, 112
          %v1139 = vadd.s32 %v1124, 120
          %vm1140 = vcmp.eq.s32.totalorder %v1124, %v474
          %vm1141 = vcmp.eq.s32.totalorder %v1125, %v474
          %vm1142 = vcmp.eq.s32.totalorder %v1126, %v474
          %vm1143 = vcmp.eq.s32.totalorder %v1127, %v474
          %vm1144 = vcmp.eq.s32.totalorder %v1128, %v474
          %vm1145 = vcmp.eq.s32.totalorder %v1129, %v474
          %vm1146 = vcmp.eq.s32.totalorder %v1130, %v474
          %vm1147 = vcmp.eq.s32.totalorder %v1131, %v474
          %vm1148 = vcmp.eq.s32.totalorder %v1132, %v474
          %vm1149 = vcmp.eq.s32.totalorder %v1133, %v474
          %vm1150 = vcmp.eq.s32.totalorder %v1134, %v474
          %vm1151 = vcmp.eq.s32.totalorder %v1135, %v474
          %vm1152 = vcmp.eq.s32.totalorder %v1136, %v474
          %vm1153 = vcmp.eq.s32.totalorder %v1137, %v474
          %vm1154 = vcmp.eq.s32.totalorder %v1138, %v474
          %vm1155 = vcmp.eq.s32.totalorder %v1139, %v474
          %1157 = vset.pattern.permute.xlu0 0
          %1158 = vperm.xlu0 %1157, %v1107
          %v1159 = vpop.permute.xlu0 %1158
          %1162 = vset.pattern.permute.xlu0 0
          %1163 = vperm.xlu0 %1162, %v1108
          %v1164 = vpop.permute.xlu0 %1163
          %1167 = vset.pattern.permute.xlu0 0
          %1168 = vperm.xlu0 %1167, %v1109
          %v1169 = vpop.permute.xlu0 %1168
          %1172 = vset.pattern.permute.xlu0 0
          %1173 = vperm.xlu0 %1172, %v1110
          %v1174 = vpop.permute.xlu0 %1173
          %1177 = vset.pattern.permute.xlu0 0
          %1178 = vperm.xlu0 %1177, %v1111
          %v1179 = vpop.permute.xlu0 %1178
          %1182 = vset.pattern.permute.xlu0 0
          %1183 = vperm.xlu0 %1182, %v1112
          %v1184 = vpop.permute.xlu0 %1183
          %1187 = vset.pattern.permute.xlu0 0
          %1188 = vperm.xlu0 %1187, %v1113
          %v1189 = vpop.permute.xlu0 %1188
          %1192 = vset.pattern.permute.xlu0 0
          %1193 = vperm.xlu0 %1192, %v1114
          %v1194 = vpop.permute.xlu0 %1193
          %1197 = vset.pattern.permute.xlu0 0
          %1198 = vperm.xlu0 %1197, %v1115
          %v1199 = vpop.permute.xlu0 %1198
          %1202 = vset.pattern.permute.xlu0 0
          %1203 = vperm.xlu0 %1202, %v1116
          %v1204 = vpop.permute.xlu0 %1203
          %1207 = vset.pattern.permute.xlu0 0
          %1208 = vperm.xlu0 %1207, %v1117
          %v1209 = vpop.permute.xlu0 %1208
          %1212 = vset.pattern.permute.xlu0 0
          %1213 = vperm.xlu0 %1212, %v1118
          %v1214 = vpop.permute.xlu0 %1213
          %1217 = vset.pattern.permute.xlu0 0
          %1218 = vperm.xlu0 %1217, %v1119
          %v1219 = vpop.permute.xlu0 %1218
          %1222 = vset.pattern.permute.xlu0 0
          %1223 = vperm.xlu0 %1222, %v1120
          %v1224 = vpop.permute.xlu0 %1223
          %1227 = vset.pattern.permute.xlu0 0
          %1228 = vperm.xlu0 %1227, %v1121
          %v1229 = vpop.permute.xlu0 %1228
          %1232 = vset.pattern.permute.xlu0 0
          %1233 = vperm.xlu0 %1232, %v1122
          %v1234 = vpop.permute.xlu0 %1233
          %v1236 = vsel %vm1140, %v1159, 0.0
          %v1237 = vsel %vm1141, %v1164, 0.0
          %v1238 = vsel %vm1142, %v1169, 0.0
          %v1239 = vsel %vm1143, %v1174, 0.0
          %v1240 = vsel %vm1144, %v1179, 0.0
          %v1241 = vsel %vm1145, %v1184, 0.0
          %v1242 = vsel %vm1146, %v1189, 0.0
          %v1243 = vsel %vm1147, %v1194, 0.0
          %v1244 = vsel %vm1148, %v1199, 0.0
          %v1245 = vsel %vm1149, %v1204, 0.0
          %v1246 = vsel %vm1150, %v1209, 0.0
          %v1247 = vsel %vm1151, %v1214, 0.0
          %v1248 = vsel %vm1152, %v1219, 0.0
          %v1249 = vsel %vm1153, %v1224, 0.0
          %v1250 = vsel %vm1154, %v1229, 0.0
          %v1251 = vsel %vm1155, %v1234, 0.0
          %v1252 = vadd.f32 %v1236, %v1237
          %v1253 = vadd.f32 %v1252, %v1238
          %v1254 = vadd.f32 %v1253, %v1239
          %v1255 = vadd.f32 %v1254, %v1240
          %v1256 = vadd.f32 %v1255, %v1241
          %v1257 = vadd.f32 %v1256, %v1242
          %v1258 = vadd.f32 %v1257, %v1243
          %v1259 = vadd.f32 %v1258, %v1244
          %v1260 = vadd.f32 %v1259, %v1245
          %v1261 = vadd.f32 %v1260, %v1246
          %v1262 = vadd.f32 %v1261, %v1247
          %v1263 = vadd.f32 %v1262, %v1248
          %v1264 = vadd.f32 %v1263, %v1249
          %v1265 = vadd.f32 %v1264, %v1250
          %v1266 = vadd.f32 %v1265, %v1251
          %v1267 = vrot.slane %v1266, 4
          %v1268 = vadd.f32 %v1266, %v1267
          %v1269 = vrot.slane %v1268, 2
          %v1270 = vadd.f32 %v1268, %v1269
          %v1271 = vrot.slane %v1270, 1
          %v1272 = vadd.f32 %v1270, %v1271
          %1273 = vst [vmem:[#allocation6] sm:$0x1] %v1272
        $region81: #{tpu_custom_call.1} parent=68 // pred_fallthru
          _
        // Predicated region
        $region82: #{tpu_custom_call.1} parent=68 // pred_check
          %p1274 = pneg %p123
        $region83: #{tpu_custom_call.1} parent=68 // pred_check_branch
          %1276 = sbr.rel (%p1274) target = $region85
        $region84: #{tpu_custom_call.1} parent=68 // pred_region
          %1278 = vsyncadd [#allocation7], 0
          %s1279 = scalar_lea.hbm %s3, %s19
          %s1281 = sshll.u32 [#allocation6], 4
          %s1282 = int_to_ptr.vmem [resolvable:$true] %s1281
          %s1283 = sshll.u32 %s1279, 4
          %s1284 = int_to_ptr.hbm [resolvable:$true] %s1283
          %1286 = dma.vmem_to_hbm [thread:$0]  %s1282, 16, %s1284, [#allocation7]
        $region85: #{tpu_custom_call.1} parent=68 // pred_fallthru
          _
        // Predicated region
        $region86: #{tpu_custom_call.1} parent=68 // pred_check
          %p1287 = pneg %p123
        $region87: #{tpu_custom_call.1} parent=68 // pred_check_branch
          %1289 = sbr.rel (%p1287) target = $region89
        $region88: #{tpu_custom_call.1} parent=68 // pred_region
          %1291 = dma.done [#allocation7], 16
        $region89: #{tpu_custom_call.1} parent=68 // pred_fallthru
          _
      $region69: #{tpu_custom_call.1} parent=5 // pred_fallthru
        _
      %p1292 = scmp.le.s32.totalorder 2, %s10
      // Predicated region
      $region90: #{tpu_custom_call.1} parent=5 // pred_check
        %p1293 = pneg %p1292
      $region91: #{tpu_custom_call.1} parent=5 // pred_check_branch
        %1295 = sbr.rel (%p1293) target = $region93
      $region92: #{tpu_custom_call.1} parent=5 // pred_region
        %s1296 = ssub.s32 %s10, 2
      $region93: #{tpu_custom_call.1} parent=5 // pred_fallthru
        _
    $region6: #{tpu_custom_call.1} parent=1 // loop_footer
      %s14 = sadd.s32 1, %s10
    $region7: #{tpu_custom_call.1} parent=1 // loop_footer_branch
      %9 = sbr.rel target = $region3
    $region8: #{tpu_custom_call.1} parent=1 // loop_exit
      _
    %1297 = vsyncpa [#allocation7], 1
    %s1298 = scalar_lea.sflag [#allocation7], 1
    %1299 = vsyncpa %s1298, 1

</llo_original>
